<compile_context>
chip_gen: v7x
topology: tpu7x:2x2x1
jax: 0.10.0
libtpu: 0.0.40
codegen_flags: <defaults>
</compile_context>

<pallas_src>
import functools

import jax
import jax.numpy as jnp
from jax.experimental import pallas as pl
from jax.experimental.pallas import tpu as pltpu

INPUT_DIM = 784
H_DIM = 400
OUT_DIM = 1


def _ffn_kernel(x_ref, w1_ref, b1_ref, w2_ref, b2_ref, w3_ref, b3_ref, o_ref,
                *, out_is_scalar: bool):
    """Fused 2-hidden-layer MLP forward for one row tile, entirely in VMEM.

    bf16 MXU matmuls with f32 accumulation; bias adds in f32; tanh on bf16
    values (feeds the next bf16 dot directly; on v5e the compiler widens the
    EUP op to f32, where the MXU is the binding unit anyway).
    """
    x = x_ref[...].astype(jnp.bfloat16)
    h = jnp.dot(x, w1_ref[...], preferred_element_type=jnp.float32) + b1_ref[...]
    h = jnp.tanh(h.astype(jnp.bfloat16))
    h = jnp.dot(h, w2_ref[...], preferred_element_type=jnp.float32) + b2_ref[...]
    h = jnp.tanh(h.astype(jnp.bfloat16))
    if out_is_scalar:
        # w3_ref holds the (1, H_DIM) row in f32: VPU multiply + XLU lane
        # reduction; the padded (bm,400)x(400,1) MXU matmul is pure waste.
        out = jnp.sum(h.astype(jnp.float32) * w3_ref[...], axis=-1,
                      keepdims=True) + b3_ref[...]
    else:
        out = jnp.dot(h, w3_ref[...], preferred_element_type=jnp.float32) + b3_ref[...]
    o_ref[...] = out.astype(o_ref.dtype)


def _round_up(x: int, m: int) -> int:
    return (x + m - 1) // m * m


def feedforward_net(x: jax.Array, params, *, input_dim: int = INPUT_DIM,
                    block_m: int = 1024) -> jax.Array:
    """Forward pass of FeedFowardNet. `params` = ((w1,b1),(w2,b2),(w3,b3)),
    weights stored as (in, out) so y = x @ w + b (== PyTorch x @ W.T + b)."""
    (w1, b1), (w2, b2), (w3, b3) = params
    x2 = x.reshape(-1, input_dim)                  # x.view(-1, input_dim)
    M = x2.shape[0]
    out_dim = w3.shape[1]
    out_is_scalar = (out_dim == 1)

    # MXU operands in bf16 (one-time wrapper cast; they sit resident in VMEM
    # at half size). Biases stay f32 (f32 bias add / accumulation in-kernel).
    w1k = w1.astype(jnp.bfloat16)
    w2k = w2.astype(jnp.bfloat16)
    if out_is_scalar:
        w3k = w3.reshape(1, -1).astype(jnp.float32)    # (1, h_dim) row for VPU path
    else:
        w3k = w3.astype(jnp.bfloat16)

    # Row-tile selection:
    #  * large tiles amortize the per-grid-step overhead,
    #  * >=2 grid steps when M is big enough so v7x megacore can split the
    #    'parallel' axis across its two TensorCores,
    #  * bm must be a multiple of 8 (sublane) unless it is the full extent.
    block_m = max(8, (block_m // 8) * 8)
    if M <= block_m:
        if M >= 256:
            bm = min(block_m, _round_up(pl.cdiv(M, 2), 8))
        else:
            bm = M                                  # single full-extent block
    else:
        bm = block_m
    grid = (pl.cdiv(M, bm),)    # no jnp.pad: Pallas masks the partial last tile

    def full_spec(arr):
        return pl.BlockSpec(arr.shape, lambda i: (0, 0))

    kernel = functools.partial(_ffn_kernel, out_is_scalar=out_is_scalar)

    return pl.pallas_call(
        kernel,
        out_shape=jax.ShapeDtypeStruct((M, out_dim), x.dtype),
        grid_spec=pltpu.PrefetchScalarGridSpec(
            num_scalar_prefetch=0,
            grid=grid,
            in_specs=[
                pl.BlockSpec((bm, input_dim), lambda i: (i, 0)),   # x row tile
                full_spec(w1k), full_spec(b1),                     # resident
                full_spec(w2k), full_spec(b2),
                full_spec(w3k), full_spec(b3),
            ],
            out_specs=pl.BlockSpec((bm, out_dim), lambda i: (i, 0)),
        ),
        compiler_params=pltpu.CompilerParams(
            dimension_semantics=("parallel",),
            # > v5e's 16 MiB default scoped VMEM, <= v7x's 32 MiB scoped cap;
            # footprint at bm=1024 is ~14 MB (x double-buffer + bf16 weights
            # + f32/bf16 hidden temporaries).
            vmem_limit_bytes=32 * 1024 * 1024,
        ),
    )(x2, w1k, b1, w2k, b2, w3k, b3)


def init_params(key, input_dim=INPUT_DIM, h_dim=H_DIM, output_dim=OUT_DIM):
    """PyTorch-style nn.Linear init: U(-1/sqrt(fan_in), 1/sqrt(fan_in))."""
    ks = jax.random.split(key, 6)

    def linear(kw, kb, fan_in, fan_out):
        bound = 1.0 / (fan_in ** 0.5)
        w = jax.random.uniform(kw, (fan_in, fan_out), jnp.float32, -bound, bound)
        b = jax.random.uniform(kb, (1, fan_out), jnp.float32, -bound, bound)
        return w, b

    return (
        linear(ks[0], ks[1], input_dim, h_dim),
        linear(ks[2], ks[3], h_dim, h_dim),
        linear(ks[4], ks[5], h_dim, output_dim),
    )


def ffn_reference(x, params, input_dim=INPUT_DIM):
    (w1, b1), (w2, b2), (w3, b3) = params
    x2 = x.reshape(-1, input_dim)
    h = jnp.tanh(x2 @ w1 + b1)
    h = jnp.tanh(h @ w2 + b2)
    return h @ w3 + b3


if __name__ == "__main__":
    key = jax.random.PRNGKey(0)
    k_params, k_x1, k_x2 = jax.random.split(key, 3)

    params = init_params(k_params)

    # Small MNIST-like input: 8 images of 1x28x28 -> view(-1, 784) -> (8, 784).
    x = jax.random.normal(k_x1, (8, 1, 28, 28), dtype=jnp.float32)
    y = feedforward_net(x, params)
    jax.block_until_ready(y)
    y_ref = ffn_reference(x, params)
    assert y.shape == (8, OUT_DIM) and y.dtype == x.dtype
    assert bool(jnp.all(jnp.isfinite(y)))
    assert bool(jnp.allclose(y, y_ref, rtol=2e-2, atol=2e-2)), (
        f"max abs diff {float(jnp.max(jnp.abs(y - y_ref)))}"
    )

    # Exercise the multi-tile grid + masked partial last tile (no jnp.pad path)
    # cheaply: M=300 with a forced 128-row tile -> 3 tiles, last one partial.
    x_big = jax.random.normal(k_x2, (300, INPUT_DIM), dtype=jnp.float32)
    y2 = feedforward_net(x_big, params, block_m=128)
    jax.block_until_ready(y2)
    y2_ref = ffn_reference(x_big, params)
    assert y2.shape == (300, OUT_DIM)
    assert bool(jnp.all(jnp.isfinite(y2)))
    assert bool(jnp.allclose(y2, y2_ref, rtol=2e-2, atol=2e-2)), (
        f"max abs diff {float(jnp.max(jnp.abs(y2 - y2_ref)))}"
    )

    print("KERNEL_OK")
</pallas_src>

<mosaic_0001>
module attributes {stable_mosaic.version = 11 : i64} {
  func.func @_ffn_kernel(%arg0: i32, %arg1: memref<8x784xf32, #tpu.memory_space<vmem>>, %arg2: memref<784x400xbf16, #tpu.memory_space<vmem>>, %arg3: memref<1x400xf32, #tpu.memory_space<vmem>>, %arg4: memref<400x400xbf16, #tpu.memory_space<vmem>>, %arg5: memref<1x400xf32, #tpu.memory_space<vmem>>, %arg6: memref<1x400xf32, #tpu.memory_space<vmem>>, %arg7: memref<1x1xf32, #tpu.memory_space<vmem>>, %arg8: memref<8x1xf32, #tpu.memory_space<vmem>>) attributes {dimension_semantics = [#tpu.dimension_semantics<parallel>], iteration_bounds = array<i64: 1>, scalar_prefetch = 0 : i64, scratch_operands = 0 : i64, tpu.core_type = #tpu.core_type<tc>, window_params = [{transform_indices = @transform_0, window_bounds = array<i64: 8, 784>}, {pipeline_mode = #tpu.pipeline_mode<synchronous>, transform_indices = @transform_1, window_bounds = array<i64: 784, 400>}, {pipeline_mode = #tpu.pipeline_mode<synchronous>, transform_indices = @transform_2, window_bounds = array<i64: 1, 400>}, {pipeline_mode = #tpu.pipeline_mode<synchronous>, transform_indices = @transform_3, window_bounds = array<i64: 400, 400>}, {pipeline_mode = #tpu.pipeline_mode<synchronous>, transform_indices = @transform_4, window_bounds = array<i64: 1, 400>}, {pipeline_mode = #tpu.pipeline_mode<synchronous>, transform_indices = @transform_5, window_bounds = array<i64: 1, 400>}, {pipeline_mode = #tpu.pipeline_mode<synchronous>, transform_indices = @transform_6, window_bounds = array<i64: 1, 1>}, {transform_indices = @transform_7, window_bounds = array<i64: 8, 1>}]} {
    %c0 = arith.constant 0 : index
    %c0_0 = arith.constant 0 : index
    %0 = vector.load %arg1[%c0, %c0_0] : memref<8x784xf32, #tpu.memory_space<vmem>>, vector<8x784xf32>
    %1 = arith.truncf %0 : vector<8x784xf32> to vector<8x784xbf16>
    %c0_1 = arith.constant 0 : index
    %c0_2 = arith.constant 0 : index
    %2 = vector.load %arg2[%c0_1, %c0_2] : memref<784x400xbf16, #tpu.memory_space<vmem>>, vector<784x400xbf16>
    %cst = arith.constant dense<0.000000e+00> : vector<8x400xf32>
    %3 = tpu.matmul %1, %2, %cst {dimension_numbers = #tpu.dot_dimension_numbers<[1], [0], [0], [1], [0, 0, 1, 1], [], []>} : vector<8x784xbf16>, vector<784x400xbf16>, vector<8x400xf32> -> vector<8x400xf32>
    %c0_3 = arith.constant 0 : index
    %c0_4 = arith.constant 0 : index
    %4 = vector.load %arg3[%c0_3, %c0_4] : memref<1x400xf32, #tpu.memory_space<vmem>>, vector<1x400xf32>
    %5 = vector.broadcast %4 : vector<1x400xf32> to vector<8x400xf32>
    %6 = arith.addf %3, %5 : vector<8x400xf32>
    %7 = arith.truncf %6 : vector<8x400xf32> to vector<8x400xbf16>
    %8 = math.tanh %7 : vector<8x400xbf16>
    %c0_5 = arith.constant 0 : index
    %c0_6 = arith.constant 0 : index
    %9 = vector.load %arg4[%c0_5, %c0_6] : memref<400x400xbf16, #tpu.memory_space<vmem>>, vector<400x400xbf16>
    %cst_7 = arith.constant dense<0.000000e+00> : vector<8x400xf32>
    %10 = tpu.matmul %8, %9, %cst_7 {dimension_numbers = #tpu.dot_dimension_numbers<[1], [0], [0], [1], [0, 0, 1, 1], [], []>} : vector<8x400xbf16>, vector<400x400xbf16>, vector<8x400xf32> -> vector<8x400xf32>
    %c0_8 = arith.constant 0 : index
    %c0_9 = arith.constant 0 : index
    %11 = vector.load %arg5[%c0_8, %c0_9] : memref<1x400xf32, #tpu.memory_space<vmem>>, vector<1x400xf32>
    %12 = vector.broadcast %11 : vector<1x400xf32> to vector<8x400xf32>
    %13 = arith.addf %10, %12 : vector<8x400xf32>
    %14 = arith.truncf %13 : vector<8x400xf32> to vector<8x400xbf16>
    %15 = math.tanh %14 : vector<8x400xbf16>
    %16 = arith.extf %15 : vector<8x400xbf16> to vector<8x400xf32>
    %c0_10 = arith.constant 0 : index
    %c0_11 = arith.constant 0 : index
    %17 = vector.load %arg6[%c0_10, %c0_11] : memref<1x400xf32, #tpu.memory_space<vmem>>, vector<1x400xf32>
    %18 = vector.broadcast %17 : vector<1x400xf32> to vector<8x400xf32>
    %19 = arith.mulf %16, %18 : vector<8x400xf32>
    %cst_12 = arith.constant dense<0.000000e+00> : vector<8xf32>
    %20 = vector.multi_reduction <add>, %19, %cst_12 [1] : vector<8x400xf32> to vector<8xf32>
    %21 = vector.shape_cast %20 : vector<8xf32> to vector<8x1xf32>
    %c0_13 = arith.constant 0 : index
    %c0_14 = arith.constant 0 : index
    %22 = vector.load %arg7[%c0_13, %c0_14] : memref<1x1xf32, #tpu.memory_space<vmem>>, vector<1x1xf32>
    %23 = vector.broadcast %22 : vector<1x1xf32> to vector<8x1xf32>
    %24 = arith.addf %21, %23 : vector<8x1xf32>
    %c0_15 = arith.constant 0 : index
    %c0_16 = arith.constant 0 : index
    %25 = vector.load %arg8[%c0_15, %c0_16] : memref<8x1xf32, #tpu.memory_space<vmem>>, vector<8x1xf32>
    tpu.vector_store %arg8[%c0_15, %c0_16], %24 {strides = array<i32>} : memref<8x1xf32, #tpu.memory_space<vmem>>, vector<8x1xf32>,
    return
  }
  func.func @transform_0(%arg0: i32) -> (i32, i32) {
    %c0_i32 = arith.constant 0 : i32
    %c0_i32_0 = arith.constant 0 : i32
    return %arg0, %c0_i32 : i32, i32
  }
  func.func @transform_1(%arg0: i32) -> (i32, i32) {
    %c0_i32 = arith.constant 0 : i32
    %c0_i32_0 = arith.constant 0 : i32
    %c0_i32_1 = arith.constant 0 : i32
    return %c0_i32, %c0_i32_0 : i32, i32
  }
  func.func @transform_2(%arg0: i32) -> (i32, i32) {
    %c0_i32 = arith.constant 0 : i32
    %c0_i32_0 = arith.constant 0 : i32
    %c0_i32_1 = arith.constant 0 : i32
    return %c0_i32, %c0_i32_0 : i32, i32
  }
  func.func @transform_3(%arg0: i32) -> (i32, i32) {
    %c0_i32 = arith.constant 0 : i32
    %c0_i32_0 = arith.constant 0 : i32
    %c0_i32_1 = arith.constant 0 : i32
    return %c0_i32, %c0_i32_0 : i32, i32
  }
  func.func @transform_4(%arg0: i32) -> (i32, i32) {
    %c0_i32 = arith.constant 0 : i32
    %c0_i32_0 = arith.constant 0 : i32
    %c0_i32_1 = arith.constant 0 : i32
    return %c0_i32, %c0_i32_0 : i32, i32
  }
  func.func @transform_5(%arg0: i32) -> (i32, i32) {
    %c0_i32 = arith.constant 0 : i32
    %c0_i32_0 = arith.constant 0 : i32
    %c0_i32_1 = arith.constant 0 : i32
    return %c0_i32, %c0_i32_0 : i32, i32
  }
  func.func @transform_6(%arg0: i32) -> (i32, i32) {
    %c0_i32 = arith.constant 0 : i32
    %c0_i32_0 = arith.constant 0 : i32
    %c0_i32_1 = arith.constant 0 : i32
    return %c0_i32, %c0_i32_0 : i32, i32
  }
  func.func @transform_7(%arg0: i32) -> (i32, i32) {
    %c0_i32 = arith.constant 0 : i32
    %c0_i32_0 = arith.constant 0 : i32
    return %arg0, %c0_i32 : i32, i32
  }
}

</mosaic_0001>

<llo_original>
// kernel: tpu_custom_call.1
$region0: #{tpu_custom_call.1}
  #allocation0 [shape = 'u32[]', space=smem, size = 0x4, offset = 0x4, fixed_abs, tag = 'smem constant byte address 0x4 - core index']
  #allocation1 [shape = 'u32[144,128]{1,0:T(1,128)}', space=vmem, size = 0x12000, scoped, tag = 'internal scratch']
  #allocation2 [shape = 'f32[1,1]{1,0:T(1,128)S(1)}', space=vmem, size = 0x200, scoped, tag = 'scoped memory for tpu_custom_call.1']
  %s0 = inlined_call_operand.vmem [shape: f32[8,784], index: 0, kind: input, shape index: {}]
  %s1 = inlined_call_operand.vmem [shape: bf16[784,400], index: 1, kind: input, shape index: {}]
  %s2 = inlined_call_operand.vmem [shape: f32[1,400], index: 2, kind: input, shape index: {}]
  %s3 = inlined_call_operand.vmem [shape: bf16[400,400], index: 3, kind: input, shape index: {}]
  %s4 = inlined_call_operand.vmem [shape: f32[1,400], index: 4, kind: input, shape index: {}]
  %s5 = inlined_call_operand.vmem [shape: f32[1,400], index: 5, kind: input, shape index: {}]
  %s6 = inlined_call_operand.<no memory space> [shape: f32[1,1], index: 6, kind: input, shape index: {}]
  %s7 = inlined_call_operand.vmem [shape: f32[8,1], index: 7, kind: output, shape index: {}]
  %s8 = sld [smem:[#allocation0]]
  $region38: #{tpu_custom_call.1} parent=0
    _
  %s10 = ssub.s32 1, %s8
  %s11 = scalar_select 0, %s10, %s8
  %v12 = vstv %s6
  %13 = vst [vmem:[#allocation2] sm:$0x1] %v12
  // Predicated region
  $region2: #{tpu_custom_call.1} parent=0 // pred_check
    _
  $region3: #{tpu_custom_call.1} parent=0 // pred_check_branch
    %15 = sbr.rel (0) target = $region5
  $region4: #{tpu_custom_call.1} parent=0 // pred_region
    _
  $region5: #{tpu_custom_call.1} parent=0 // pred_fallthru
    _
  // Predicated region
  $region6: #{tpu_custom_call.1} parent=0 // pred_check
    _
  $region7: #{tpu_custom_call.1} parent=0 // pred_check_branch
    %17 = sbr.rel (0) target = $region9
  $region8: #{tpu_custom_call.1} parent=0 // pred_region
    _
  $region9: #{tpu_custom_call.1} parent=0 // pred_fallthru
    _
  // Predicated region
  $region10: #{tpu_custom_call.1} parent=0 // pred_check
    _
  $region11: #{tpu_custom_call.1} parent=0 // pred_check_branch
    %19 = sbr.rel (0) target = $region13
  $region12: #{tpu_custom_call.1} parent=0 // pred_region
    _
  $region13: #{tpu_custom_call.1} parent=0 // pred_fallthru
    _
  // Predicated region
  $region14: #{tpu_custom_call.1} parent=0 // pred_check
    _
  $region15: #{tpu_custom_call.1} parent=0 // pred_check_branch
    %21 = sbr.rel (0) target = $region17
  $region16: #{tpu_custom_call.1} parent=0 // pred_region
    _
  $region17: #{tpu_custom_call.1} parent=0 // pred_fallthru
    _
  // Predicated region
  $region18: #{tpu_custom_call.1} parent=0 // pred_check
    _
  $region19: #{tpu_custom_call.1} parent=0 // pred_check_branch
    %23 = sbr.rel (0) target = $region21
  $region20: #{tpu_custom_call.1} parent=0 // pred_region
    _
  $region21: #{tpu_custom_call.1} parent=0 // pred_fallthru
    _
  // Predicated region
  $region22: #{tpu_custom_call.1} parent=0 // pred_check
    _
  $region23: #{tpu_custom_call.1} parent=0 // pred_check_branch
    %25 = sbr.rel (0) target = $region25
  $region24: #{tpu_custom_call.1} parent=0 // pred_region
    _
  $region25: #{tpu_custom_call.1} parent=0 // pred_fallthru
    _
  // Predicated region
  $region26: #{tpu_custom_call.1} parent=0 // pred_check
    _
  $region27: #{tpu_custom_call.1} parent=0 // pred_check_branch
    %27 = sbr.rel (0) target = $region29
  $region28: #{tpu_custom_call.1} parent=0 // pred_region
    _
  $region29: #{tpu_custom_call.1} parent=0 // pred_fallthru
    _
  %v29 = vld [vmem:[%s0] sm:$0xff]
  %v30 = vld [vmem:[%s0 + $0x8] sm:$0xff]
  %v31 = vld [vmem:[%s0 + $0x10] sm:$0xff]
  %v32 = vld [vmem:[%s0 + $0x18] sm:$0xff]
  %v33 = vld [vmem:[%s0 + $0x20] sm:$0xff]
  %v34 = vld [vmem:[%s0 + $0x28] sm:$0xff]
  %v35 = vld [vmem:[%s0 + $0x30] sm:$0xff]
  %v36 = vpack.c.bf16 %v29, %v29
  %v37 = vpack.c.bf16 %v30, %v30
  %v38 = vpack.c.bf16 %v31, %v31
  %v39 = vpack.c.bf16 %v32, %v32
  %v40 = vpack.c.bf16 %v33, %v33
  %v41 = vpack.c.bf16 %v34, %v34
  %v42 = vpack.c.bf16 %v35, %v35
  %v43 = vld [vmem:[%s1] sm:$0xff]
  %v44 = vld [vmem:[%s1 + $0x8] sm:$0xff]
  %v45 = vld [vmem:[%s1 + $0x10] sm:$0xff]
  %v46 = vld [vmem:[%s1 + $0x18] sm:$0xff]
  %v47 = vld [vmem:[%s1 + $0x20] sm:$0xff]
  %v48 = vld [vmem:[%s1 + $0x28] sm:$0xff]
  %v49 = vld [vmem:[%s1 + $0x30] sm:$0xff]
  %v50 = vld [vmem:[%s1 + $0x38] sm:$0xff]
  %v51 = vld [vmem:[%s1 + $0x40] sm:$0xff]
  %v52 = vld [vmem:[%s1 + $0x48] sm:$0xff]
  %v53 = vld [vmem:[%s1 + $0x50] sm:$0xff]
  %v54 = vld [vmem:[%s1 + $0x58] sm:$0xff]
  %v55 = vld [vmem:[%s1 + $0x60] sm:$0xff]
  %v56 = vld [vmem:[%s1 + $0x68] sm:$0xff]
  %v57 = vld [vmem:[%s1 + $0x70] sm:$0xff]
  %v58 = vld [vmem:[%s1 + $0x78] sm:$0xff]
  %v59 = vld [vmem:[%s1 + $0x80] sm:$0xff]
  %v60 = vld [vmem:[%s1 + $0x88] sm:$0xff]
  %v61 = vld [vmem:[%s1 + $0x90] sm:$0xff]
  %v62 = vld [vmem:[%s1 + $0x98] sm:$0xff]
  %v63 = vld [vmem:[%s1 + $0xa0] sm:$0xff]
  %v64 = vld [vmem:[%s1 + $0xa8] sm:$0xff]
  %v65 = vld [vmem:[%s1 + $0xb0] sm:$0xff]
  %v66 = vld [vmem:[%s1 + $0xb8] sm:$0xff]
  %v67 = vld [vmem:[%s1 + $0xc0] sm:$0xff]
  %v68 = vld [vmem:[%s1 + $0xc8] sm:$0xff]
  %v69 = vld [vmem:[%s1 + $0xd0] sm:$0xff]
  %v70 = vld [vmem:[%s1 + $0xd8] sm:$0xff]
  %v71 = vld [vmem:[%s1 + $0xe0] sm:$0xff]
  %v72 = vld [vmem:[%s1 + $0xe8] sm:$0xff]
  %v73 = vld [vmem:[%s1 + $0xf0] sm:$0xff]
  %v74 = vld [vmem:[%s1 + $0xf8] sm:$0xff]
  %v75 = vld [vmem:[%s1 + $0x100] sm:$0xff]
  %v76 = vld [vmem:[%s1 + $0x108] sm:$0xff]
  %v77 = vld [vmem:[%s1 + $0x110] sm:$0xff]
  %v78 = vld [vmem:[%s1 + $0x118] sm:$0xff]
  %v79 = vld [vmem:[%s1 + $0x120] sm:$0xff]
  %v80 = vld [vmem:[%s1 + $0x128] sm:$0xff]
  %v81 = vld [vmem:[%s1 + $0x130] sm:$0xff]
  %v82 = vld [vmem:[%s1 + $0x138] sm:$0xff]
  %v83 = vld [vmem:[%s1 + $0x140] sm:$0xff]
  %v84 = vld [vmem:[%s1 + $0x148] sm:$0xff]
  %v85 = vld [vmem:[%s1 + $0x150] sm:$0xff]
  %v86 = vld [vmem:[%s1 + $0x158] sm:$0xff]
  %v87 = vld [vmem:[%s1 + $0x160] sm:$0xff]
  %v88 = vld [vmem:[%s1 + $0x168] sm:$0xff]
  %v89 = vld [vmem:[%s1 + $0x170] sm:$0xff]
  %v90 = vld [vmem:[%s1 + $0x178] sm:$0xff]
  %v91 = vld [vmem:[%s1 + $0x180] sm:$0xff]
  %v92 = vld [vmem:[%s1 + $0x188] sm:$0xff]
  %v93 = vld [vmem:[%s1 + $0x190] sm:$0xff]
  %v94 = vld [vmem:[%s1 + $0x198] sm:$0xff]
  %v95 = vld [vmem:[%s1 + $0x1a0] sm:$0xff]
  %v96 = vld [vmem:[%s1 + $0x1a8] sm:$0xff]
  %v97 = vld [vmem:[%s1 + $0x1b0] sm:$0xff]
  %v98 = vld [vmem:[%s1 + $0x1b8] sm:$0xff]
  %v99 = vld [vmem:[%s1 + $0x1c0] sm:$0xff]
  %v100 = vld [vmem:[%s1 + $0x1c8] sm:$0xff]
  %v101 = vld [vmem:[%s1 + $0x1d0] sm:$0xff]
  %v102 = vld [vmem:[%s1 + $0x1d8] sm:$0xff]
  %v103 = vld [vmem:[%s1 + $0x1e0] sm:$0xff]
  %v104 = vld [vmem:[%s1 + $0x1e8] sm:$0xff]
  %v105 = vld [vmem:[%s1 + $0x1f0] sm:$0xff]
  %v106 = vld [vmem:[%s1 + $0x1f8] sm:$0xff]
  %v107 = vld [vmem:[%s1 + $0x200] sm:$0xff]
  %v108 = vld [vmem:[%s1 + $0x208] sm:$0xff]
  %v109 = vld [vmem:[%s1 + $0x210] sm:$0xff]
  %v110 = vld [vmem:[%s1 + $0x218] sm:$0xff]
  %v111 = vld [vmem:[%s1 + $0x220] sm:$0xff]
  %v112 = vld [vmem:[%s1 + $0x228] sm:$0xff]
  %v113 = vld [vmem:[%s1 + $0x230] sm:$0xff]
  %v114 = vld [vmem:[%s1 + $0x238] sm:$0xff]
  %v115 = vld [vmem:[%s1 + $0x240] sm:$0xff]
  %v116 = vld [vmem:[%s1 + $0x248] sm:$0xff]
  %v117 = vld [vmem:[%s1 + $0x250] sm:$0xff]
  %v118 = vld [vmem:[%s1 + $0x258] sm:$0xff]
  %v119 = vld [vmem:[%s1 + $0x260] sm:$0xff]
  %v120 = vld [vmem:[%s1 + $0x268] sm:$0xff]
  %v121 = vld [vmem:[%s1 + $0x270] sm:$0xff]
  %v122 = vld [vmem:[%s1 + $0x278] sm:$0xff]
  %v123 = vld [vmem:[%s1 + $0x280] sm:$0xff]
  %v124 = vld [vmem:[%s1 + $0x288] sm:$0xff]
  %v125 = vld [vmem:[%s1 + $0x290] sm:$0xff]
  %v126 = vld [vmem:[%s1 + $0x298] sm:$0xff]
  %v127 = vld [vmem:[%s1 + $0x2a0] sm:$0xff]
  %v128 = vld [vmem:[%s1 + $0x2a8] sm:$0xff]
  %v129 = vld [vmem:[%s1 + $0x2b0] sm:$0xff]
  %v130 = vld [vmem:[%s1 + $0x2b8] sm:$0xff]
  %v131 = vld [vmem:[%s1 + $0x2c0] sm:$0xff]
  %v132 = vld [vmem:[%s1 + $0x2c8] sm:$0xff]
  %v133 = vld [vmem:[%s1 + $0x2d0] sm:$0xff]
  %v134 = vld [vmem:[%s1 + $0x2d8] sm:$0xff]
  %v135 = vld [vmem:[%s1 + $0x2e0] sm:$0xff]
  %v136 = vld [vmem:[%s1 + $0x2e8] sm:$0xff]
  %v137 = vld [vmem:[%s1 + $0x2f0] sm:$0xff]
  %v138 = vld [vmem:[%s1 + $0x2f8] sm:$0xff]
  %v139 = vld [vmem:[%s1 + $0x300] sm:$0xff]
  %v140 = vld [vmem:[%s1 + $0x308] sm:$0xff]
  %v141 = vld [vmem:[%s1 + $0x310] sm:$0xff]
  %v142 = vld [vmem:[%s1 + $0x318] sm:$0xff]
  %v143 = vld [vmem:[%s1 + $0x320] sm:$0xff]
  %v144 = vld [vmem:[%s1 + $0x328] sm:$0xff]
  %v145 = vld [vmem:[%s1 + $0x330] sm:$0xff]
  %v146 = vld [vmem:[%s1 + $0x338] sm:$0xff]
  %v147 = vld [vmem:[%s1 + $0x340] sm:$0xff]
  %v148 = vld [vmem:[%s1 + $0x348] sm:$0xff]
  %v149 = vld [vmem:[%s1 + $0x350] sm:$0xff]
  %v150 = vld [vmem:[%s1 + $0x358] sm:$0xff]
  %v151 = vld [vmem:[%s1 + $0x360] sm:$0xff]
  %v152 = vld [vmem:[%s1 + $0x368] sm:$0xff]
  %v153 = vld [vmem:[%s1 + $0x370] sm:$0xff]
  %v154 = vld [vmem:[%s1 + $0x378] sm:$0xff]
  %v155 = vld [vmem:[%s1 + $0x380] sm:$0xff]
  %v156 = vld [vmem:[%s1 + $0x388] sm:$0xff]
  %v157 = vld [vmem:[%s1 + $0x390] sm:$0xff]
  %v158 = vld [vmem:[%s1 + $0x398] sm:$0xff]
  %v159 = vld [vmem:[%s1 + $0x3a0] sm:$0xff]
  %v160 = vld [vmem:[%s1 + $0x3a8] sm:$0xff]
  %v161 = vld [vmem:[%s1 + $0x3b0] sm:$0xff]
  %v162 = vld [vmem:[%s1 + $0x3b8] sm:$0xff]
  %v163 = vld [vmem:[%s1 + $0x3c0] sm:$0xff]
  %v164 = vld [vmem:[%s1 + $0x3c8] sm:$0xff]
  %v165 = vld [vmem:[%s1 + $0x3d0] sm:$0xff]
  %v166 = vld [vmem:[%s1 + $0x3d8] sm:$0xff]
  %v167 = vld [vmem:[%s1 + $0x3e0] sm:$0xff]
  %v168 = vld [vmem:[%s1 + $0x3e8] sm:$0xff]
  %v169 = vld [vmem:[%s1 + $0x3f0] sm:$0xff]
  %v170 = vld [vmem:[%s1 + $0x3f8] sm:$0xff]
  %v171 = vld [vmem:[%s1 + $0x400] sm:$0xff]
  %v172 = vld [vmem:[%s1 + $0x408] sm:$0xff]
  %v173 = vld [vmem:[%s1 + $0x410] sm:$0xff]
  %v174 = vld [vmem:[%s1 + $0x418] sm:$0xff]
  %v175 = vld [vmem:[%s1 + $0x420] sm:$0xff]
  %v176 = vld [vmem:[%s1 + $0x428] sm:$0xff]
  %v177 = vld [vmem:[%s1 + $0x430] sm:$0xff]
  %v178 = vld [vmem:[%s1 + $0x438] sm:$0xff]
  %v179 = vld [vmem:[%s1 + $0x440] sm:$0xff]
  %v180 = vld [vmem:[%s1 + $0x448] sm:$0xff]
  %v181 = vld [vmem:[%s1 + $0x450] sm:$0xff]
  %v182 = vld [vmem:[%s1 + $0x458] sm:$0xff]
  %v183 = vld [vmem:[%s1 + $0x460] sm:$0xff]
  %v184 = vld [vmem:[%s1 + $0x468] sm:$0xff]
  %v185 = vld [vmem:[%s1 + $0x470] sm:$0xff]
  %v186 = vld [vmem:[%s1 + $0x478] sm:$0xff]
  %v187 = vld [vmem:[%s1 + $0x480] sm:$0xff]
  %v188 = vld [vmem:[%s1 + $0x488] sm:$0xff]
  %v189 = vld [vmem:[%s1 + $0x490] sm:$0xff]
  %v190 = vld [vmem:[%s1 + $0x498] sm:$0xff]
  %v191 = vld [vmem:[%s1 + $0x4a0] sm:$0xff]
  %v192 = vld [vmem:[%s1 + $0x4a8] sm:$0xff]
  %v193 = vld [vmem:[%s1 + $0x4b0] sm:$0xff]
  %v194 = vld [vmem:[%s1 + $0x4b8] sm:$0xff]
  %v195 = vld [vmem:[%s1 + $0x4c0] sm:$0xff]
  %v196 = vld [vmem:[%s1 + $0x4c8] sm:$0xff]
  %v197 = vld [vmem:[%s1 + $0x4d0] sm:$0xff]
  %v198 = vld [vmem:[%s1 + $0x4d8] sm:$0xff]
  %v199 = vld [vmem:[%s1 + $0x4e0] sm:$0xff]
  %v200 = vld [vmem:[%s1 + $0x4e8] sm:$0xff]
  %v201 = vld [vmem:[%s1 + $0x4f0] sm:$0xff]
  %v202 = vld [vmem:[%s1 + $0x4f8] sm:$0xff]
  %v203 = vld [vmem:[%s1 + $0x500] sm:$0xff]
  %v204 = vld [vmem:[%s1 + $0x508] sm:$0xff]
  %v205 = vld [vmem:[%s1 + $0x510] sm:$0xff]
  %v206 = vld [vmem:[%s1 + $0x518] sm:$0xff]
  %v207 = vld [vmem:[%s1 + $0x520] sm:$0xff]
  %v208 = vld [vmem:[%s1 + $0x528] sm:$0xff]
  %v209 = vld [vmem:[%s1 + $0x530] sm:$0xff]
  %v210 = vld [vmem:[%s1 + $0x538] sm:$0xff]
  %v211 = vld [vmem:[%s1 + $0x540] sm:$0xff]
  %v212 = vld [vmem:[%s1 + $0x548] sm:$0xff]
  %v213 = vld [vmem:[%s1 + $0x550] sm:$0xff]
  %v214 = vld [vmem:[%s1 + $0x558] sm:$0xff]
  %v215 = vld [vmem:[%s1 + $0x560] sm:$0xff]
  %v216 = vld [vmem:[%s1 + $0x568] sm:$0xff]
  %v217 = vld [vmem:[%s1 + $0x570] sm:$0xff]
  %v218 = vld [vmem:[%s1 + $0x578] sm:$0xff]
  %v219 = vld [vmem:[%s1 + $0x580] sm:$0xff]
  %v220 = vld [vmem:[%s1 + $0x588] sm:$0xff]
  %v221 = vld [vmem:[%s1 + $0x590] sm:$0xff]
  %v222 = vld [vmem:[%s1 + $0x598] sm:$0xff]
  %v223 = vld [vmem:[%s1 + $0x5a0] sm:$0xff]
  %v224 = vld [vmem:[%s1 + $0x5a8] sm:$0xff]
  %v225 = vld [vmem:[%s1 + $0x5b0] sm:$0xff]
  %v226 = vld [vmem:[%s1 + $0x5b8] sm:$0xff]
  %v227 = vld [vmem:[%s1 + $0x5c0] sm:$0xff]
  %v228 = vld [vmem:[%s1 + $0x5c8] sm:$0xff]
  %v229 = vld [vmem:[%s1 + $0x5d0] sm:$0xff]
  %v230 = vld [vmem:[%s1 + $0x5d8] sm:$0xff]
  %v231 = vld [vmem:[%s1 + $0x5e0] sm:$0xff]
  %v232 = vld [vmem:[%s1 + $0x5e8] sm:$0xff]
  %v233 = vld [vmem:[%s1 + $0x5f0] sm:$0xff]
  %v234 = vld [vmem:[%s1 + $0x5f8] sm:$0xff]
  %v235 = vld [vmem:[%s1 + $0x600] sm:$0xff]
  %v236 = vld [vmem:[%s1 + $0x608] sm:$0xff]
  %v237 = vld [vmem:[%s1 + $0x610] sm:$0xff]
  %v238 = vld [vmem:[%s1 + $0x618] sm:$0xff]
  %v239 = vld [vmem:[%s2] sm:$0xf]
  %v241 = vlaneseq
  %v242 = vshrl.u32 %v241, 7
  %v243 = vsub.s32 0, %v242
  %v244 = vrot.slane %v239, %v243
  %v245 = vlaneseq
  %v246 = vshrl.u32 %v245, 7
  %v247 = vsub.s32 1, %v246
  %v248 = vrot.slane %v239, %v247
  %v249 = vlaneseq
  %v250 = vshrl.u32 %v249, 7
  %v251 = vsub.s32 2, %v250
  %v252 = vrot.slane %v239, %v251
  %v253 = vlaneseq
  %v254 = vshrl.u32 %v253, 7
  %v255 = vsub.s32 3, %v254
  %v256 = vrot.slane %v239, %v255
  %v457 = vunpack.c.l.b16 %v43
  %v458 = vunpack.c.h.b16 %v43
  %v459 = vunpack.c.l.b16 %v44
  %v460 = vunpack.c.h.b16 %v44
  %v461 = vunpack.c.l.b16 %v45
  %v462 = vunpack.c.h.b16 %v45
  %v463 = vunpack.c.l.b16 %v46
  %v464 = vunpack.c.h.b16 %v46
  %v465 = vunpack.c.l.b16 %v47
  %v466 = vunpack.c.h.b16 %v47
  %v467 = vunpack.c.l.b16 %v48
  %v468 = vunpack.c.h.b16 %v48
  %v469 = vunpack.c.l.b16 %v49
  %v470 = vunpack.c.h.b16 %v49
  %v471 = vunpack.c.l.b16 %v50
  %v472 = vunpack.c.h.b16 %v50
  %v473 = vunpack.c.l.b16 %v51
  %v474 = vunpack.c.h.b16 %v51
  %v475 = vunpack.c.l.b16 %v52
  %v476 = vunpack.c.h.b16 %v52
  %v477 = vunpack.c.l.b16 %v53
  %v478 = vunpack.c.h.b16 %v53
  %v479 = vunpack.c.l.b16 %v54
  %v480 = vunpack.c.h.b16 %v54
  %v481 = vunpack.c.l.b16 %v55
  %v482 = vunpack.c.h.b16 %v55
  %v483 = vunpack.c.l.b16 %v56
  %v484 = vunpack.c.h.b16 %v56
  %v485 = vunpack.c.l.b16 %v57
  %v486 = vunpack.c.h.b16 %v57
  %v487 = vunpack.c.l.b16 %v58
  %v488 = vunpack.c.h.b16 %v58
  %v489 = vunpack.c.l.b16 %v59
  %v490 = vunpack.c.h.b16 %v59
  %v491 = vunpack.c.l.b16 %v60
  %v492 = vunpack.c.h.b16 %v60
  %v493 = vunpack.c.l.b16 %v61
  %v494 = vunpack.c.h.b16 %v61
  %v495 = vunpack.c.l.b16 %v62
  %v496 = vunpack.c.h.b16 %v62
  %v497 = vunpack.c.l.b16 %v63
  %v498 = vunpack.c.h.b16 %v63
  %v499 = vunpack.c.l.b16 %v64
  %v500 = vunpack.c.h.b16 %v64
  %v501 = vunpack.c.l.b16 %v65
  %v502 = vunpack.c.h.b16 %v65
  %v503 = vunpack.c.l.b16 %v66
  %v504 = vunpack.c.h.b16 %v66
  %v505 = vunpack.c.l.b16 %v67
  %v506 = vunpack.c.h.b16 %v67
  %v507 = vunpack.c.l.b16 %v68
  %v508 = vunpack.c.h.b16 %v68
  %v509 = vunpack.c.l.b16 %v69
  %v510 = vunpack.c.h.b16 %v69
  %v511 = vunpack.c.l.b16 %v70
  %v512 = vunpack.c.h.b16 %v70
  %v513 = vunpack.c.l.b16 %v71
  %v514 = vunpack.c.h.b16 %v71
  %v515 = vunpack.c.l.b16 %v72
  %v516 = vunpack.c.h.b16 %v72
  %v517 = vunpack.c.l.b16 %v73
  %v518 = vunpack.c.h.b16 %v73
  %v519 = vunpack.c.l.b16 %v74
  %v520 = vunpack.c.h.b16 %v74
  %v521 = vunpack.c.l.b16 %v75
  %v522 = vunpack.c.h.b16 %v75
  %v523 = vunpack.c.l.b16 %v76
  %v524 = vunpack.c.h.b16 %v76
  %v525 = vunpack.c.l.b16 %v77
  %v526 = vunpack.c.h.b16 %v77
  %v527 = vunpack.c.l.b16 %v78
  %v528 = vunpack.c.h.b16 %v78
  %v529 = vunpack.c.l.b16 %v79
  %v530 = vunpack.c.h.b16 %v79
  %v531 = vunpack.c.l.b16 %v80
  %v532 = vunpack.c.h.b16 %v80
  %v533 = vunpack.c.l.b16 %v81
  %v534 = vunpack.c.h.b16 %v81
  %v535 = vunpack.c.l.b16 %v82
  %v536 = vunpack.c.h.b16 %v82
  %v537 = vunpack.c.l.b16 %v83
  %v538 = vunpack.c.h.b16 %v83
  %v539 = vunpack.c.l.b16 %v84
  %v540 = vunpack.c.h.b16 %v84
  %v541 = vunpack.c.l.b16 %v85
  %v542 = vunpack.c.h.b16 %v85
  %v543 = vunpack.c.l.b16 %v86
  %v544 = vunpack.c.h.b16 %v86
  %v545 = vunpack.c.l.b16 %v87
  %v546 = vunpack.c.h.b16 %v87
  %v547 = vunpack.c.l.b16 %v88
  %v548 = vunpack.c.h.b16 %v88
  %v549 = vunpack.c.l.b16 %v89
  %v550 = vunpack.c.h.b16 %v89
  %v551 = vunpack.c.l.b16 %v90
  %v552 = vunpack.c.h.b16 %v90
  %v553 = vunpack.c.l.b16 %v91
  %v554 = vunpack.c.h.b16 %v91
  %v555 = vunpack.c.l.b16 %v92
  %v556 = vunpack.c.h.b16 %v92
  %v557 = vunpack.c.l.b16 %v93
  %v558 = vunpack.c.h.b16 %v93
  %v559 = vunpack.c.l.b16 %v94
  %v560 = vunpack.c.h.b16 %v94
  %v561 = vunpack.c.l.b16 %v95
  %v562 = vunpack.c.h.b16 %v95
  %v563 = vunpack.c.l.b16 %v96
  %v564 = vunpack.c.h.b16 %v96
  %v565 = vunpack.c.l.b16 %v97
  %v566 = vunpack.c.h.b16 %v97
  %v567 = vunpack.c.l.b16 %v98
  %v568 = vunpack.c.h.b16 %v98
  %v569 = vunpack.c.l.b16 %v99
  %v570 = vunpack.c.h.b16 %v99
  %v571 = vunpack.c.l.b16 %v100
  %v572 = vunpack.c.h.b16 %v100
  %v573 = vunpack.c.l.b16 %v101
  %v574 = vunpack.c.h.b16 %v101
  %v575 = vunpack.c.l.b16 %v102
  %v576 = vunpack.c.h.b16 %v102
  %v577 = vunpack.c.l.b16 %v103
  %v578 = vunpack.c.h.b16 %v103
  %v579 = vunpack.c.l.b16 %v104
  %v580 = vunpack.c.h.b16 %v104
  %v581 = vunpack.c.l.b16 %v105
  %v582 = vunpack.c.h.b16 %v105
  %v583 = vunpack.c.l.b16 %v106
  %v584 = vunpack.c.h.b16 %v106
  %v585 = vunpack.c.l.b16 %v107
  %v586 = vunpack.c.h.b16 %v107
  %v587 = vunpack.c.l.b16 %v108
  %v588 = vunpack.c.h.b16 %v108
  %v589 = vunpack.c.l.b16 %v109
  %v590 = vunpack.c.h.b16 %v109
  %v591 = vunpack.c.l.b16 %v110
  %v592 = vunpack.c.h.b16 %v110
  %v593 = vunpack.c.l.b16 %v111
  %v594 = vunpack.c.h.b16 %v111
  %v595 = vunpack.c.l.b16 %v112
  %v596 = vunpack.c.h.b16 %v112
  %v597 = vunpack.c.l.b16 %v113
  %v598 = vunpack.c.h.b16 %v113
  %v599 = vunpack.c.l.b16 %v114
  %v600 = vunpack.c.h.b16 %v114
  %v601 = vunpack.c.l.b16 %v115
  %v602 = vunpack.c.h.b16 %v115
  %v603 = vunpack.c.l.b16 %v116
  %v604 = vunpack.c.h.b16 %v116
  %v605 = vunpack.c.l.b16 %v117
  %v606 = vunpack.c.h.b16 %v117
  %v607 = vunpack.c.l.b16 %v118
  %v608 = vunpack.c.h.b16 %v118
  %v609 = vunpack.c.l.b16 %v119
  %v610 = vunpack.c.h.b16 %v119
  %v611 = vunpack.c.l.b16 %v120
  %v612 = vunpack.c.h.b16 %v120
  %v613 = vunpack.c.l.b16 %v121
  %v614 = vunpack.c.h.b16 %v121
  %v615 = vunpack.c.l.b16 %v122
  %v616 = vunpack.c.h.b16 %v122
  %v617 = vunpack.c.l.b16 %v123
  %v618 = vunpack.c.h.b16 %v123
  %v619 = vunpack.c.l.b16 %v124
  %v620 = vunpack.c.h.b16 %v124
  %v621 = vunpack.c.l.b16 %v125
  %v622 = vunpack.c.h.b16 %v125
  %v623 = vunpack.c.l.b16 %v126
  %v624 = vunpack.c.h.b16 %v126
  %v625 = vunpack.c.l.b16 %v127
  %v626 = vunpack.c.h.b16 %v127
  %v627 = vunpack.c.l.b16 %v128
  %v628 = vunpack.c.h.b16 %v128
  %v629 = vunpack.c.l.b16 %v129
  %v630 = vunpack.c.h.b16 %v129
  %v631 = vunpack.c.l.b16 %v130
  %v632 = vunpack.c.h.b16 %v130
  %v633 = vunpack.c.l.b16 %v131
  %v634 = vunpack.c.h.b16 %v131
  %v635 = vunpack.c.l.b16 %v132
  %v636 = vunpack.c.h.b16 %v132
  %v637 = vunpack.c.l.b16 %v133
  %v638 = vunpack.c.h.b16 %v133
  %v639 = vunpack.c.l.b16 %v134
  %v640 = vunpack.c.h.b16 %v134
  %v641 = vunpack.c.l.b16 %v135
  %v642 = vunpack.c.h.b16 %v135
  %v643 = vunpack.c.l.b16 %v136
  %v644 = vunpack.c.h.b16 %v136
  %v645 = vunpack.c.l.b16 %v137
  %v646 = vunpack.c.h.b16 %v137
  %v647 = vunpack.c.l.b16 %v138
  %v648 = vunpack.c.h.b16 %v138
  %v649 = vunpack.c.l.b16 %v139
  %v650 = vunpack.c.h.b16 %v139
  %v651 = vunpack.c.l.b16 %v140
  %v652 = vunpack.c.h.b16 %v140
  %v653 = vunpack.c.l.b16 %v141
  %v654 = vunpack.c.h.b16 %v141
  %v655 = vunpack.c.l.b16 %v142
  %v656 = vunpack.c.h.b16 %v142
  %v657 = vunpack.c.l.b16 %v143
  %v658 = vunpack.c.h.b16 %v143
  %v659 = vunpack.c.l.b16 %v144
  %v660 = vunpack.c.h.b16 %v144
  %v661 = vunpack.c.l.b16 %v145
  %v662 = vunpack.c.h.b16 %v145
  %v663 = vunpack.c.l.b16 %v146
  %v664 = vunpack.c.h.b16 %v146
  %v665 = vunpack.c.l.b16 %v147
  %v666 = vunpack.c.h.b16 %v147
  %v667 = vunpack.c.l.b16 %v148
  %v668 = vunpack.c.h.b16 %v148
  %v669 = vunpack.c.l.b16 %v149
  %v670 = vunpack.c.h.b16 %v149
  %v671 = vunpack.c.l.b16 %v150
  %v672 = vunpack.c.h.b16 %v150
  %v673 = vunpack.c.l.b16 %v151
  %v674 = vunpack.c.h.b16 %v151
  %v675 = vunpack.c.l.b16 %v152
  %v676 = vunpack.c.h.b16 %v152
  %v677 = vunpack.c.l.b16 %v153
  %v678 = vunpack.c.h.b16 %v153
  %v679 = vunpack.c.l.b16 %v154
  %v680 = vunpack.c.h.b16 %v154
  %v681 = vunpack.c.l.b16 %v155
  %v682 = vunpack.c.h.b16 %v155
  %v683 = vunpack.c.l.b16 %v156
  %v684 = vunpack.c.h.b16 %v156
  %v685 = vunpack.c.l.b16 %v157
  %v686 = vunpack.c.h.b16 %v157
  %v687 = vunpack.c.l.b16 %v158
  %v688 = vunpack.c.h.b16 %v158
  %v689 = vunpack.c.l.b16 %v159
  %v690 = vunpack.c.h.b16 %v159
  %v691 = vunpack.c.l.b16 %v160
  %v692 = vunpack.c.h.b16 %v160
  %v693 = vunpack.c.l.b16 %v161
  %v694 = vunpack.c.h.b16 %v161
  %v695 = vunpack.c.l.b16 %v162
  %v696 = vunpack.c.h.b16 %v162
  %v697 = vunpack.c.l.b16 %v163
  %v698 = vunpack.c.h.b16 %v163
  %v699 = vunpack.c.l.b16 %v164
  %v700 = vunpack.c.h.b16 %v164
  %v701 = vunpack.c.l.b16 %v165
  %v702 = vunpack.c.h.b16 %v165
  %v703 = vunpack.c.l.b16 %v166
  %v704 = vunpack.c.h.b16 %v166
  %v705 = vunpack.c.l.b16 %v167
  %v706 = vunpack.c.h.b16 %v167
  %v707 = vunpack.c.l.b16 %v168
  %v708 = vunpack.c.h.b16 %v168
  %v709 = vunpack.c.l.b16 %v169
  %v710 = vunpack.c.h.b16 %v169
  %v711 = vunpack.c.l.b16 %v170
  %v712 = vunpack.c.h.b16 %v170
  %v713 = vunpack.c.l.b16 %v171
  %v714 = vunpack.c.h.b16 %v171
  %v715 = vunpack.c.l.b16 %v172
  %v716 = vunpack.c.h.b16 %v172
  %v717 = vunpack.c.l.b16 %v173
  %v718 = vunpack.c.h.b16 %v173
  %v719 = vunpack.c.l.b16 %v174
  %v720 = vunpack.c.h.b16 %v174
  %v721 = vunpack.c.l.b16 %v175
  %v722 = vunpack.c.h.b16 %v175
  %v723 = vunpack.c.l.b16 %v176
  %v724 = vunpack.c.h.b16 %v176
  %v725 = vunpack.c.l.b16 %v177
  %v726 = vunpack.c.h.b16 %v177
  %v727 = vunpack.c.l.b16 %v178
  %v728 = vunpack.c.h.b16 %v178
  %v729 = vunpack.c.l.b16 %v179
  %v730 = vunpack.c.h.b16 %v179
  %v731 = vunpack.c.l.b16 %v180
  %v732 = vunpack.c.h.b16 %v180
  %v733 = vunpack.c.l.b16 %v181
  %v734 = vunpack.c.h.b16 %v181
  %v735 = vunpack.c.l.b16 %v182
  %v736 = vunpack.c.h.b16 %v182
  %v737 = vunpack.c.l.b16 %v183
  %v738 = vunpack.c.h.b16 %v183
  %v739 = vunpack.c.l.b16 %v184
  %v740 = vunpack.c.h.b16 %v184
  %v741 = vunpack.c.l.b16 %v185
  %v742 = vunpack.c.h.b16 %v185
  %v743 = vunpack.c.l.b16 %v186
  %v744 = vunpack.c.h.b16 %v186
  %v745 = vunpack.c.l.b16 %v187
  %v746 = vunpack.c.h.b16 %v187
  %v747 = vunpack.c.l.b16 %v188
  %v748 = vunpack.c.h.b16 %v188
  %v749 = vunpack.c.l.b16 %v189
  %v750 = vunpack.c.h.b16 %v189
  %v751 = vunpack.c.l.b16 %v190
  %v752 = vunpack.c.h.b16 %v190
  %v753 = vunpack.c.l.b16 %v191
  %v754 = vunpack.c.h.b16 %v191
  %v755 = vunpack.c.l.b16 %v192
  %v756 = vunpack.c.h.b16 %v192
  %v757 = vunpack.c.l.b16 %v193
  %v758 = vunpack.c.h.b16 %v193
  %v759 = vunpack.c.l.b16 %v194
  %v760 = vunpack.c.h.b16 %v194
  %v761 = vunpack.c.l.b16 %v195
  %v762 = vunpack.c.h.b16 %v195
  %v763 = vunpack.c.l.b16 %v196
  %v764 = vunpack.c.h.b16 %v196
  %v765 = vunpack.c.l.b16 %v197
  %v766 = vunpack.c.h.b16 %v197
  %v767 = vunpack.c.l.b16 %v198
  %v768 = vunpack.c.h.b16 %v198
  %v769 = vunpack.c.l.b16 %v199
  %v770 = vunpack.c.h.b16 %v199
  %v771 = vunpack.c.l.b16 %v200
  %v772 = vunpack.c.h.b16 %v200
  %v773 = vunpack.c.l.b16 %v201
  %v774 = vunpack.c.h.b16 %v201
  %v775 = vunpack.c.l.b16 %v202
  %v776 = vunpack.c.h.b16 %v202
  %v777 = vunpack.c.l.b16 %v203
  %v778 = vunpack.c.h.b16 %v203
  %v779 = vunpack.c.l.b16 %v204
  %v780 = vunpack.c.h.b16 %v204
  %v781 = vunpack.c.l.b16 %v205
  %v782 = vunpack.c.h.b16 %v205
  %v783 = vunpack.c.l.b16 %v206
  %v784 = vunpack.c.h.b16 %v206
  %v785 = vunpack.c.l.b16 %v207
  %v786 = vunpack.c.h.b16 %v207
  %v787 = vunpack.c.l.b16 %v208
  %v788 = vunpack.c.h.b16 %v208
  %v789 = vunpack.c.l.b16 %v209
  %v790 = vunpack.c.h.b16 %v209
  %v791 = vunpack.c.l.b16 %v210
  %v792 = vunpack.c.h.b16 %v210
  %v793 = vunpack.c.l.b16 %v211
  %v794 = vunpack.c.h.b16 %v211
  %v795 = vunpack.c.l.b16 %v212
  %v796 = vunpack.c.h.b16 %v212
  %v797 = vunpack.c.l.b16 %v213
  %v798 = vunpack.c.h.b16 %v213
  %v799 = vunpack.c.l.b16 %v214
  %v800 = vunpack.c.h.b16 %v214
  %v801 = vunpack.c.l.b16 %v215
  %v802 = vunpack.c.h.b16 %v215
  %v803 = vunpack.c.l.b16 %v216
  %v804 = vunpack.c.h.b16 %v216
  %v805 = vunpack.c.l.b16 %v217
  %v806 = vunpack.c.h.b16 %v217
  %v807 = vunpack.c.l.b16 %v218
  %v808 = vunpack.c.h.b16 %v218
  %v809 = vunpack.c.l.b16 %v219
  %v810 = vunpack.c.h.b16 %v219
  %v811 = vunpack.c.l.b16 %v220
  %v812 = vunpack.c.h.b16 %v220
  %v813 = vunpack.c.l.b16 %v221
  %v814 = vunpack.c.h.b16 %v221
  %v815 = vunpack.c.l.b16 %v222
  %v816 = vunpack.c.h.b16 %v222
  %v817 = vunpack.c.l.b16 %v223
  %v818 = vunpack.c.h.b16 %v223
  %v819 = vunpack.c.l.b16 %v224
  %v820 = vunpack.c.h.b16 %v224
  %v821 = vunpack.c.l.b16 %v225
  %v822 = vunpack.c.h.b16 %v225
  %v823 = vunpack.c.l.b16 %v226
  %v824 = vunpack.c.h.b16 %v226
  %v825 = vunpack.c.l.b16 %v227
  %v826 = vunpack.c.h.b16 %v227
  %v827 = vunpack.c.l.b16 %v228
  %v828 = vunpack.c.h.b16 %v228
  %v829 = vunpack.c.l.b16 %v229
  %v830 = vunpack.c.h.b16 %v229
  %v831 = vunpack.c.l.b16 %v230
  %v832 = vunpack.c.h.b16 %v230
  %v833 = vunpack.c.l.b16 %v231
  %v834 = vunpack.c.h.b16 %v231
  %v835 = vunpack.c.l.b16 %v232
  %v836 = vunpack.c.h.b16 %v232
  %v837 = vunpack.c.l.b16 %v233
  %v838 = vunpack.c.h.b16 %v233
  %v839 = vunpack.c.l.b16 %v234
  %v840 = vunpack.c.h.b16 %v234
  %v841 = vunpack.c.l.b16 %v235
  %v842 = vunpack.c.h.b16 %v235
  %v843 = vunpack.c.l.b16 %v236
  %v844 = vunpack.c.h.b16 %v236
  %v845 = vunpack.c.l.b16 %v237
  %v846 = vunpack.c.h.b16 %v237
  %v847 = vunpack.c.l.b16 %v238
  %v848 = vunpack.c.h.b16 %v238
  %v849 = vpack.c.b16 %v461, %v457
  %v850 = vpack.c.b16 %v462, %v458
  %v851 = vpack.c.b16 %v463, %v459
  %v852 = vpack.c.b16 %v464, %v460
  %v853 = vpack.c.b16 %v469, %v465
  %v854 = vpack.c.b16 %v470, %v466
  %v855 = vpack.c.b16 %v471, %v467
  %v856 = vpack.c.b16 %v472, %v468
  %v857 = vpack.c.b16 %v477, %v473
  %v858 = vpack.c.b16 %v478, %v474
  %v859 = vpack.c.b16 %v479, %v475
  %v860 = vpack.c.b16 %v480, %v476
  %v861 = vpack.c.b16 %v485, %v481
  %v862 = vpack.c.b16 %v486, %v482
  %v863 = vpack.c.b16 %v487, %v483
  %v864 = vpack.c.b16 %v488, %v484
  %v865 = vpack.c.b16 %v493, %v489
  %v866 = vpack.c.b16 %v494, %v490
  %v867 = vpack.c.b16 %v495, %v491
  %v868 = vpack.c.b16 %v496, %v492
  %v869 = vpack.c.b16 %v501, %v497
  %v870 = vpack.c.b16 %v502, %v498
  %v871 = vpack.c.b16 %v503, %v499
  %v872 = vpack.c.b16 %v504, %v500
  %v873 = vpack.c.b16 %v509, %v505
  %v874 = vpack.c.b16 %v510, %v506
  %v875 = vpack.c.b16 %v511, %v507
  %v876 = vpack.c.b16 %v512, %v508
  %v877 = vpack.c.b16 %v517, %v513
  %v878 = vpack.c.b16 %v518, %v514
  %v879 = vpack.c.b16 %v519, %v515
  %v880 = vpack.c.b16 %v520, %v516
  %v881 = vpack.c.b16 %v525, %v521
  %v882 = vpack.c.b16 %v526, %v522
  %v883 = vpack.c.b16 %v527, %v523
  %v884 = vpack.c.b16 %v528, %v524
  %v885 = vpack.c.b16 %v533, %v529
  %v886 = vpack.c.b16 %v534, %v530
  %v887 = vpack.c.b16 %v535, %v531
  %v888 = vpack.c.b16 %v536, %v532
  %v889 = vpack.c.b16 %v541, %v537
  %v890 = vpack.c.b16 %v542, %v538
  %v891 = vpack.c.b16 %v543, %v539
  %v892 = vpack.c.b16 %v544, %v540
  %v893 = vpack.c.b16 %v549, %v545
  %v894 = vpack.c.b16 %v550, %v546
  %v895 = vpack.c.b16 %v551, %v547
  %v896 = vpack.c.b16 %v552, %v548
  %v897 = vpack.c.b16 %v557, %v553
  %v898 = vpack.c.b16 %v558, %v554
  %v899 = vpack.c.b16 %v559, %v555
  %v900 = vpack.c.b16 %v560, %v556
  %v901 = vpack.c.b16 %v565, %v561
  %v902 = vpack.c.b16 %v566, %v562
  %v903 = vpack.c.b16 %v567, %v563
  %v904 = vpack.c.b16 %v568, %v564
  %v905 = vpack.c.b16 %v573, %v569
  %v906 = vpack.c.b16 %v574, %v570
  %v907 = vpack.c.b16 %v575, %v571
  %v908 = vpack.c.b16 %v576, %v572
  %v909 = vpack.c.b16 %v581, %v577
  %v910 = vpack.c.b16 %v582, %v578
  %v911 = vpack.c.b16 %v583, %v579
  %v912 = vpack.c.b16 %v584, %v580
  %v913 = vpack.c.b16 %v589, %v585
  %v914 = vpack.c.b16 %v590, %v586
  %v915 = vpack.c.b16 %v591, %v587
  %v916 = vpack.c.b16 %v592, %v588
  %v917 = vpack.c.b16 %v597, %v593
  %v918 = vpack.c.b16 %v598, %v594
  %v919 = vpack.c.b16 %v599, %v595
  %v920 = vpack.c.b16 %v600, %v596
  %v921 = vpack.c.b16 %v605, %v601
  %v922 = vpack.c.b16 %v606, %v602
  %v923 = vpack.c.b16 %v607, %v603
  %v924 = vpack.c.b16 %v608, %v604
  %v925 = vpack.c.b16 %v613, %v609
  %v926 = vpack.c.b16 %v614, %v610
  %v927 = vpack.c.b16 %v615, %v611
  %v928 = vpack.c.b16 %v616, %v612
  %v929 = vpack.c.b16 %v621, %v617
  %v930 = vpack.c.b16 %v622, %v618
  %v931 = vpack.c.b16 %v623, %v619
  %v932 = vpack.c.b16 %v624, %v620
  %v933 = vpack.c.b16 %v629, %v625
  %v934 = vpack.c.b16 %v630, %v626
  %v935 = vpack.c.b16 %v631, %v627
  %v936 = vpack.c.b16 %v632, %v628
  %v937 = vpack.c.b16 %v637, %v633
  %v938 = vpack.c.b16 %v638, %v634
  %v939 = vpack.c.b16 %v639, %v635
  %v940 = vpack.c.b16 %v640, %v636
  %v941 = vpack.c.b16 %v645, %v641
  %v942 = vpack.c.b16 %v646, %v642
  %v943 = vpack.c.b16 %v647, %v643
  %v944 = vpack.c.b16 %v648, %v644
  %v945 = vpack.c.b16 %v653, %v649
  %v946 = vpack.c.b16 %v654, %v650
  %v947 = vpack.c.b16 %v655, %v651
  %v948 = vpack.c.b16 %v656, %v652
  %v949 = vpack.c.b16 %v661, %v657
  %v950 = vpack.c.b16 %v662, %v658
  %v951 = vpack.c.b16 %v663, %v659
  %v952 = vpack.c.b16 %v664, %v660
  %v953 = vpack.c.b16 %v669, %v665
  %v954 = vpack.c.b16 %v670, %v666
  %v955 = vpack.c.b16 %v671, %v667
  %v956 = vpack.c.b16 %v672, %v668
  %v957 = vpack.c.b16 %v677, %v673
  %v958 = vpack.c.b16 %v678, %v674
  %v959 = vpack.c.b16 %v679, %v675
  %v960 = vpack.c.b16 %v680, %v676
  %v961 = vpack.c.b16 %v685, %v681
  %v962 = vpack.c.b16 %v686, %v682
  %v963 = vpack.c.b16 %v687, %v683
  %v964 = vpack.c.b16 %v688, %v684
  %v965 = vpack.c.b16 %v693, %v689
  %v966 = vpack.c.b16 %v694, %v690
  %v967 = vpack.c.b16 %v695, %v691
  %v968 = vpack.c.b16 %v696, %v692
  %v969 = vpack.c.b16 %v701, %v697
  %v970 = vpack.c.b16 %v702, %v698
  %v971 = vpack.c.b16 %v703, %v699
  %v972 = vpack.c.b16 %v704, %v700
  %v973 = vpack.c.b16 %v709, %v705
  %v974 = vpack.c.b16 %v710, %v706
  %v975 = vpack.c.b16 %v711, %v707
  %v976 = vpack.c.b16 %v712, %v708
  %v977 = vpack.c.b16 %v717, %v713
  %v978 = vpack.c.b16 %v718, %v714
  %v979 = vpack.c.b16 %v719, %v715
  %v980 = vpack.c.b16 %v720, %v716
  %v981 = vpack.c.b16 %v725, %v721
  %v982 = vpack.c.b16 %v726, %v722
  %v983 = vpack.c.b16 %v727, %v723
  %v984 = vpack.c.b16 %v728, %v724
  %v985 = vpack.c.b16 %v733, %v729
  %v986 = vpack.c.b16 %v734, %v730
  %v987 = vpack.c.b16 %v735, %v731
  %v988 = vpack.c.b16 %v736, %v732
  %v989 = vpack.c.b16 %v741, %v737
  %v990 = vpack.c.b16 %v742, %v738
  %v991 = vpack.c.b16 %v743, %v739
  %v992 = vpack.c.b16 %v744, %v740
  %v993 = vpack.c.b16 %v749, %v745
  %v994 = vpack.c.b16 %v750, %v746
  %v995 = vpack.c.b16 %v751, %v747
  %v996 = vpack.c.b16 %v752, %v748
  %v997 = vpack.c.b16 %v757, %v753
  %v998 = vpack.c.b16 %v758, %v754
  %v999 = vpack.c.b16 %v759, %v755
  %v1000 = vpack.c.b16 %v760, %v756
  %v1001 = vpack.c.b16 %v765, %v761
  %v1002 = vpack.c.b16 %v766, %v762
  %v1003 = vpack.c.b16 %v767, %v763
  %v1004 = vpack.c.b16 %v768, %v764
  %v1005 = vpack.c.b16 %v773, %v769
  %v1006 = vpack.c.b16 %v774, %v770
  %v1007 = vpack.c.b16 %v775, %v771
  %v1008 = vpack.c.b16 %v776, %v772
  %v1009 = vpack.c.b16 %v781, %v777
  %v1010 = vpack.c.b16 %v782, %v778
  %v1011 = vpack.c.b16 %v783, %v779
  %v1012 = vpack.c.b16 %v784, %v780
  %v1013 = vpack.c.b16 %v789, %v785
  %v1014 = vpack.c.b16 %v790, %v786
  %v1015 = vpack.c.b16 %v791, %v787
  %v1016 = vpack.c.b16 %v792, %v788
  %v1017 = vpack.c.b16 %v797, %v793
  %v1018 = vpack.c.b16 %v798, %v794
  %v1019 = vpack.c.b16 %v799, %v795
  %v1020 = vpack.c.b16 %v800, %v796
  %v1021 = vpack.c.b16 %v805, %v801
  %v1022 = vpack.c.b16 %v806, %v802
  %v1023 = vpack.c.b16 %v807, %v803
  %v1024 = vpack.c.b16 %v808, %v804
  %v1025 = vpack.c.b16 %v813, %v809
  %v1026 = vpack.c.b16 %v814, %v810
  %v1027 = vpack.c.b16 %v815, %v811
  %v1028 = vpack.c.b16 %v816, %v812
  %v1029 = vpack.c.b16 %v821, %v817
  %v1030 = vpack.c.b16 %v822, %v818
  %v1031 = vpack.c.b16 %v823, %v819
  %v1032 = vpack.c.b16 %v824, %v820
  %v1033 = vpack.c.b16 %v829, %v825
  %v1034 = vpack.c.b16 %v830, %v826
  %v1035 = vpack.c.b16 %v831, %v827
  %v1036 = vpack.c.b16 %v832, %v828
  %v1037 = vpack.c.b16 %v837, %v833
  %v1038 = vpack.c.b16 %v838, %v834
  %v1039 = vpack.c.b16 %v839, %v835
  %v1040 = vpack.c.b16 %v840, %v836
  %v1041 = vpack.c.b16 %v845, %v841
  %v1042 = vpack.c.b16 %v846, %v842
  %v1043 = vpack.c.b16 %v847, %v843
  %v1044 = vpack.c.b16 %v848, %v844
  %vm1241 = vcmask 130048
  %v1243 = vsel %vm1241, %v42, 0
  %1245 = vmatprep.subr.bf16.mxu0 %v850
  %1246 = vmatpush1.bf16.msra.mxu0 %v849
  %1247 = vmatprep.subr.bf16.mxu0 %v854
  %1248 = vmatpush1.bf16.msra.mxu0 %v853
  %1249 = vmatprep.subr.bf16.mxu0 %v858
  %1250 = vmatpush1.bf16.msra.mxu0 %v857
  %1251 = vmatprep.subr.bf16.mxu0 %v862
  %1252 = vmatpush1.bf16.msra.mxu0 %v861
  %1253 = vmatprep.subr.bf16.mxu0 %v866
  %1254 = vmatpush1.bf16.msra.mxu0 %v865
  %1255 = vmatprep.subr.bf16.mxu0 %v870
  %1256 = vmatpush1.bf16.msra.mxu0 %v869
  %1257 = vmatprep.subr.bf16.mxu0 %v874
  %1258 = vmatpush1.bf16.msra.mxu0 %v873
  %1259 = vmatprep.subr.bf16.mxu0 %v878
  %1260 = vmatpush1.bf16.msra.mxu0 %v877
  %1261 = vmatprep.subr.bf16.mxu0 %v882
  %1262 = vmatpush1.bf16.msra.mxu0 %v881
  %1263 = vmatprep.subr.bf16.mxu0 %v886
  %1264 = vmatpush1.bf16.msra.mxu0 %v885
  %1265 = vmatprep.subr.bf16.mxu0 %v890
  %1266 = vmatpush1.bf16.msra.mxu0 %v889
  %1267 = vmatprep.subr.bf16.mxu0 %v894
  %1268 = vmatpush1.bf16.msra.mxu0 %v893
  %1269 = vmatprep.subr.bf16.mxu0 %v898
  %1270 = vmatpush1.bf16.msra.mxu0 %v897
  %1271 = vmatprep.subr.bf16.mxu0 %v902
  %1272 = vmatpush1.bf16.msra.mxu0 %v901
  %1273 = vmatprep.subr.bf16.mxu0 %v906
  %1274 = vmatpush1.bf16.msra.mxu0 %v905
  %1275 = vmatprep.subr.bf16.mxu0 %v910
  %1276 = vmatpush1.bf16.msra.mxu0 %v909
  %1277 = vmatprep.mubr.bf16.mxu0 %v37
  %1278 = vmatmul.mubr.bf16.gmra.mrb[0].mxu0 %v36
  %v1279 = vpop.f32.mrb[0].mxu0
  %v1280 = vadd.f32 %v244, %v1279
  %v1281 = vpop.f32.mrb[0].mxu0
  %v1282 = vadd.f32 %v248, %v1281
  %v1283 = vpop.f32.mrb[0].mxu0
  %v1284 = vpop.f32.mrb[0].mxu0
  %1285 = vdwg.mxu0
  %1286 = vmatprep.subr.bf16.mxu0 %v914
  %1287 = vmatpush1.bf16.msra.mxu0 %v913
  %1288 = vmatprep.subr.bf16.mxu0 %v918
  %1289 = vmatpush1.bf16.msra.mxu0 %v917
  %1290 = vmatprep.subr.bf16.mxu0 %v922
  %1291 = vmatpush1.bf16.msra.mxu0 %v921
  %1292 = vmatprep.subr.bf16.mxu0 %v926
  %1293 = vmatpush1.bf16.msra.mxu0 %v925
  %1294 = vmatprep.subr.bf16.mxu0 %v930
  %1295 = vmatpush1.bf16.msra.mxu0 %v929
  %1296 = vmatprep.subr.bf16.mxu0 %v934
  %1297 = vmatpush1.bf16.msra.mxu0 %v933
  %1298 = vmatprep.subr.bf16.mxu0 %v938
  %1299 = vmatpush1.bf16.msra.mxu0 %v937
  %1300 = vmatprep.subr.bf16.mxu0 %v942
  %1301 = vmatpush1.bf16.msra.mxu0 %v941
  %1302 = vmatprep.subr.bf16.mxu0 %v946
  %1303 = vmatpush1.bf16.msra.mxu0 %v945
  %1304 = vmatprep.subr.bf16.mxu0 %v950
  %1305 = vmatpush1.bf16.msra.mxu0 %v949
  %1306 = vmatprep.subr.bf16.mxu0 %v954
  %1307 = vmatpush1.bf16.msra.mxu0 %v953
  %1308 = vmatprep.subr.bf16.mxu0 %v958
  %1309 = vmatpush1.bf16.msra.mxu0 %v957
  %1310 = vmatprep.subr.bf16.mxu0 %v962
  %1311 = vmatpush1.bf16.msra.mxu0 %v961
  %1312 = vmatprep.subr.bf16.mxu0 %v966
  %1313 = vmatpush1.bf16.msra.mxu0 %v965
  %1314 = vmatprep.subr.bf16.mxu0 %v970
  %1315 = vmatpush1.bf16.msra.mxu0 %v969
  %1316 = vmatprep.subr.bf16.mxu0 %v974
  %1317 = vmatpush1.bf16.msra.mxu0 %v973
  %1318 = vmatprep.mubr.bf16.mxu0 %v39
  %1319 = vmatmul.mubr.bf16.gmra.mrb[0].mxu0 %v38
  %v1320 = vpop.f32.mrb[0].mxu0
  %v1321 = vadd.f32 %v1280, %v1320
  %v1322 = vpop.f32.mrb[0].mxu0
  %v1323 = vadd.f32 %v1282, %v1322
  %v1324 = vpop.f32.mrb[0].mxu0
  %v1325 = vpop.f32.mrb[0].mxu0
  %1326 = vdwg.mxu0
  %1327 = vmatprep.subr.bf16.mxu0 %v978
  %1328 = vmatpush1.bf16.msra.mxu0 %v977
  %1329 = vmatprep.subr.bf16.mxu0 %v982
  %1330 = vmatpush1.bf16.msra.mxu0 %v981
  %1331 = vmatprep.subr.bf16.mxu0 %v986
  %1332 = vmatpush1.bf16.msra.mxu0 %v985
  %1333 = vmatprep.subr.bf16.mxu0 %v990
  %1334 = vmatpush1.bf16.msra.mxu0 %v989
  %1335 = vmatprep.subr.bf16.mxu0 %v994
  %1336 = vmatpush1.bf16.msra.mxu0 %v993
  %1337 = vmatprep.subr.bf16.mxu0 %v998
  %1338 = vmatpush1.bf16.msra.mxu0 %v997
  %1339 = vmatprep.subr.bf16.mxu0 %v1002
  %1340 = vmatpush1.bf16.msra.mxu0 %v1001
  %1341 = vmatprep.subr.bf16.mxu0 %v1006
  %1342 = vmatpush1.bf16.msra.mxu0 %v1005
  %1343 = vmatprep.subr.bf16.mxu0 %v1010
  %1344 = vmatpush1.bf16.msra.mxu0 %v1009
  %1345 = vmatprep.subr.bf16.mxu0 %v1014
  %1346 = vmatpush1.bf16.msra.mxu0 %v1013
  %1347 = vmatprep.subr.bf16.mxu0 %v1018
  %1348 = vmatpush1.bf16.msra.mxu0 %v1017
  %1349 = vmatprep.subr.bf16.mxu0 %v1022
  %1350 = vmatpush1.bf16.msra.mxu0 %v1021
  %1351 = vmatprep.subr.bf16.mxu0 %v1026
  %1352 = vmatpush1.bf16.msra.mxu0 %v1025
  %1353 = vmatprep.subr.bf16.mxu0 %v1030
  %1354 = vmatpush1.bf16.msra.mxu0 %v1029
  %1355 = vmatprep.subr.bf16.mxu0 %v1034
  %1356 = vmatpush1.bf16.msra.mxu0 %v1033
  %1357 = vmatprep.subr.bf16.mxu0 %v1038
  %1358 = vmatpush1.bf16.msra.mxu0 %v1037
  %1359 = vmatprep.mubr.bf16.mxu0 %v41
  %1360 = vmatmul.mubr.bf16.gmra.mrb[0].mxu0 %v40
  %v1361 = vpop.f32.mrb[0].mxu0
  %v1362 = vadd.f32 %v1321, %v1361
  %v1363 = vpop.f32.mrb[0].mxu0
  %v1364 = vadd.f32 %v1323, %v1363
  %v1365 = vpop.f32.mrb[0].mxu0
  %v1366 = vpop.f32.mrb[0].mxu0
  %1367 = vdwg.mxu0
  %1368 = vmatprep.subr.bf16.mxu0 %v1042
  %1369 = vmatpush1.bf16.msra.mxu0 %v1041
  %1370 = vmatprep.subr.bf16.mxu0 0
  %1371 = vmatpush1.bf16.msra.mxu0 0
  %1372 = vmatprep.subr.bf16.mxu0 0
  %1373 = vmatpush1.bf16.msra.mxu0 0
  %1374 = vmatprep.subr.bf16.mxu0 0
  %1375 = vmatpush1.bf16.msra.mxu0 0
  %1376 = vmatprep.subr.bf16.mxu0 0
  %1377 = vmatpush1.bf16.msra.mxu0 0
  %1378 = vmatprep.subr.bf16.mxu0 0
  %1379 = vmatpush1.bf16.msra.mxu0 0
  %1380 = vmatprep.subr.bf16.mxu0 0
  %1381 = vmatpush1.bf16.msra.mxu0 0
  %1382 = vmatprep.subr.bf16.mxu0 0
  %1383 = vmatpush1.bf16.msra.mxu0 0
  %1384 = vmatprep.subr.bf16.mxu0 0
  %1385 = vmatpush1.bf16.msra.mxu0 0
  %1386 = vmatprep.subr.bf16.mxu0 0
  %1387 = vmatpush1.bf16.msra.mxu0 0
  %1388 = vmatprep.subr.bf16.mxu0 0
  %1389 = vmatpush1.bf16.msra.mxu0 0
  %1390 = vmatprep.subr.bf16.mxu0 0
  %1391 = vmatpush1.bf16.msra.mxu0 0
  %1392 = vmatprep.subr.bf16.mxu0 0
  %1393 = vmatpush1.bf16.msra.mxu0 0
  %1394 = vmatprep.subr.bf16.mxu0 0
  %1395 = vmatpush1.bf16.msra.mxu0 0
  %1396 = vmatprep.subr.bf16.mxu0 0
  %1397 = vmatpush1.bf16.msra.mxu0 0
  %1398 = vmatprep.subr.bf16.mxu0 0
  %1399 = vmatpush1.bf16.msra.mxu0 0
  %1400 = vmatprep.mubr.bf16.mxu0 0
  %1401 = vmatmul.mubr.bf16.gmra.mrb[0].mxu0 %v1243
  %v1402 = vpop.f32.mrb[0].mxu0
  %v1403 = vadd.f32 %v1362, %v1402
  %v1404 = vpop.f32.mrb[0].mxu0
  %v1405 = vadd.f32 %v1364, %v1404
  %v1406 = vpop.f32.mrb[0].mxu0
  %v1407 = vpop.f32.mrb[0].mxu0
  %1408 = vdwg.mxu0
  %1409 = vmatprep.subr.bf16.mxu0 %v852
  %1410 = vmatpush1.bf16.msra.mxu0 %v851
  %1411 = vmatprep.subr.bf16.mxu0 %v856
  %1412 = vmatpush1.bf16.msra.mxu0 %v855
  %1413 = vmatprep.subr.bf16.mxu0 %v860
  %1414 = vmatpush1.bf16.msra.mxu0 %v859
  %1415 = vmatprep.subr.bf16.mxu0 %v864
  %1416 = vmatpush1.bf16.msra.mxu0 %v863
  %1417 = vmatprep.subr.bf16.mxu0 %v868
  %1418 = vmatpush1.bf16.msra.mxu0 %v867
  %1419 = vmatprep.subr.bf16.mxu0 %v872
  %1420 = vmatpush1.bf16.msra.mxu0 %v871
  %1421 = vmatprep.subr.bf16.mxu0 %v876
  %1422 = vmatpush1.bf16.msra.mxu0 %v875
  %1423 = vmatprep.subr.bf16.mxu0 %v880
  %1424 = vmatpush1.bf16.msra.mxu0 %v879
  %1425 = vmatprep.subr.bf16.mxu0 %v884
  %1426 = vmatpush1.bf16.msra.mxu0 %v883
  %1427 = vmatprep.subr.bf16.mxu0 %v888
  %1428 = vmatpush1.bf16.msra.mxu0 %v887
  %1429 = vmatprep.subr.bf16.mxu0 %v892
  %1430 = vmatpush1.bf16.msra.mxu0 %v891
  %1431 = vmatprep.subr.bf16.mxu0 %v896
  %1432 = vmatpush1.bf16.msra.mxu0 %v895
  %1433 = vmatprep.subr.bf16.mxu0 %v900
  %1434 = vmatpush1.bf16.msra.mxu0 %v899
  %1435 = vmatprep.subr.bf16.mxu0 %v904
  %1436 = vmatpush1.bf16.msra.mxu0 %v903
  %1437 = vmatprep.subr.bf16.mxu0 %v908
  %1438 = vmatpush1.bf16.msra.mxu0 %v907
  %1439 = vmatprep.subr.bf16.mxu0 %v912
  %1440 = vmatpush1.bf16.msra.mxu0 %v911
  %1441 = vmatprep.mubr.bf16.mxu0 %v37
  %1442 = vmatmul.mubr.bf16.gmra.mrb[0].mxu0 %v36
  %v1443 = vpop.f32.mrb[0].mxu0
  %v1444 = vadd.f32 %v252, %v1443
  %v1445 = vpop.f32.mrb[0].mxu0
  %v1446 = vadd.f32 %v256, %v1445
  %v1447 = vpop.f32.mrb[0].mxu0
  %v1448 = vpop.f32.mrb[0].mxu0
  %1449 = vdwg.mxu0
  %1450 = vmatprep.subr.bf16.mxu0 %v916
  %1451 = vmatpush1.bf16.msra.mxu0 %v915
  %1452 = vmatprep.subr.bf16.mxu0 %v920
  %1453 = vmatpush1.bf16.msra.mxu0 %v919
  %1454 = vmatprep.subr.bf16.mxu0 %v924
  %1455 = vmatpush1.bf16.msra.mxu0 %v923
  %1456 = vmatprep.subr.bf16.mxu0 %v928
  %1457 = vmatpush1.bf16.msra.mxu0 %v927
  %1458 = vmatprep.subr.bf16.mxu0 %v932
  %1459 = vmatpush1.bf16.msra.mxu0 %v931
  %1460 = vmatprep.subr.bf16.mxu0 %v936
  %1461 = vmatpush1.bf16.msra.mxu0 %v935
  %1462 = vmatprep.subr.bf16.mxu0 %v940
  %1463 = vmatpush1.bf16.msra.mxu0 %v939
  %1464 = vmatprep.subr.bf16.mxu0 %v944
  %1465 = vmatpush1.bf16.msra.mxu0 %v943
  %1466 = vmatprep.subr.bf16.mxu0 %v948
  %1467 = vmatpush1.bf16.msra.mxu0 %v947
  %1468 = vmatprep.subr.bf16.mxu0 %v952
  %1469 = vmatpush1.bf16.msra.mxu0 %v951
  %1470 = vmatprep.subr.bf16.mxu0 %v956
  %1471 = vmatpush1.bf16.msra.mxu0 %v955
  %1472 = vmatprep.subr.bf16.mxu0 %v960
  %1473 = vmatpush1.bf16.msra.mxu0 %v959
  %1474 = vmatprep.subr.bf16.mxu0 %v964
  %1475 = vmatpush1.bf16.msra.mxu0 %v963
  %1476 = vmatprep.subr.bf16.mxu0 %v968
  %1477 = vmatpush1.bf16.msra.mxu0 %v967
  %1478 = vmatprep.subr.bf16.mxu0 %v972
  %1479 = vmatpush1.bf16.msra.mxu0 %v971
  %1480 = vmatprep.subr.bf16.mxu0 %v976
  %1481 = vmatpush1.bf16.msra.mxu0 %v975
  %1482 = vmatprep.mubr.bf16.mxu0 %v39
  %1483 = vmatmul.mubr.bf16.gmra.mrb[0].mxu0 %v38
  %v1484 = vpop.f32.mrb[0].mxu0
  %v1485 = vadd.f32 %v1444, %v1484
  %v1486 = vpop.f32.mrb[0].mxu0
  %v1487 = vadd.f32 %v1446, %v1486
  %v1488 = vpop.f32.mrb[0].mxu0
  %v1489 = vpop.f32.mrb[0].mxu0
  %1490 = vdwg.mxu0
  %1491 = vmatprep.subr.bf16.mxu0 %v980
  %1492 = vmatpush1.bf16.msra.mxu0 %v979
  %1493 = vmatprep.subr.bf16.mxu0 %v984
  %1494 = vmatpush1.bf16.msra.mxu0 %v983
  %1495 = vmatprep.subr.bf16.mxu0 %v988
  %1496 = vmatpush1.bf16.msra.mxu0 %v987
  %1497 = vmatprep.subr.bf16.mxu0 %v992
  %1498 = vmatpush1.bf16.msra.mxu0 %v991
  %1499 = vmatprep.subr.bf16.mxu0 %v996
  %1500 = vmatpush1.bf16.msra.mxu0 %v995
  %1501 = vmatprep.subr.bf16.mxu0 %v1000
  %1502 = vmatpush1.bf16.msra.mxu0 %v999
  %1503 = vmatprep.subr.bf16.mxu0 %v1004
  %1504 = vmatpush1.bf16.msra.mxu0 %v1003
  %1505 = vmatprep.subr.bf16.mxu0 %v1008
  %1506 = vmatpush1.bf16.msra.mxu0 %v1007
  %1507 = vmatprep.subr.bf16.mxu0 %v1012
  %1508 = vmatpush1.bf16.msra.mxu0 %v1011
  %1509 = vmatprep.subr.bf16.mxu0 %v1016
  %1510 = vmatpush1.bf16.msra.mxu0 %v1015
  %1511 = vmatprep.subr.bf16.mxu0 %v1020
  %1512 = vmatpush1.bf16.msra.mxu0 %v1019
  %1513 = vmatprep.subr.bf16.mxu0 %v1024
  %1514 = vmatpush1.bf16.msra.mxu0 %v1023
  %1515 = vmatprep.subr.bf16.mxu0 %v1028
  %1516 = vmatpush1.bf16.msra.mxu0 %v1027
  %1517 = vmatprep.subr.bf16.mxu0 %v1032
  %1518 = vmatpush1.bf16.msra.mxu0 %v1031
  %1519 = vmatprep.subr.bf16.mxu0 %v1036
  %1520 = vmatpush1.bf16.msra.mxu0 %v1035
  %1521 = vmatprep.subr.bf16.mxu0 %v1040
  %1522 = vmatpush1.bf16.msra.mxu0 %v1039
  %1523 = vmatprep.mubr.bf16.mxu0 %v41
  %1524 = vmatmul.mubr.bf16.gmra.mrb[0].mxu0 %v40
  %v1525 = vpop.f32.mrb[0].mxu0
  %v1526 = vadd.f32 %v1485, %v1525
  %v1527 = vpop.f32.mrb[0].mxu0
  %v1528 = vadd.f32 %v1487, %v1527
  %v1529 = vpop.f32.mrb[0].mxu0
  %v1530 = vpop.f32.mrb[0].mxu0
  %1531 = vdwg.mxu0
  %1532 = vmatprep.subr.bf16.mxu0 %v1044
  %1533 = vmatpush1.bf16.msra.mxu0 %v1043
  %1534 = vmatprep.subr.bf16.mxu0 0
  %1535 = vmatpush1.bf16.msra.mxu0 0
  %1536 = vmatprep.subr.bf16.mxu0 0
  %1537 = vmatpush1.bf16.msra.mxu0 0
  %1538 = vmatprep.subr.bf16.mxu0 0
  %1539 = vmatpush1.bf16.msra.mxu0 0
  %1540 = vmatprep.subr.bf16.mxu0 0
  %1541 = vmatpush1.bf16.msra.mxu0 0
  %1542 = vmatprep.subr.bf16.mxu0 0
  %1543 = vmatpush1.bf16.msra.mxu0 0
  %1544 = vmatprep.subr.bf16.mxu0 0
  %1545 = vmatpush1.bf16.msra.mxu0 0
  %1546 = vmatprep.subr.bf16.mxu0 0
  %1547 = vmatpush1.bf16.msra.mxu0 0
  %1548 = vmatprep.subr.bf16.mxu0 0
  %1549 = vmatpush1.bf16.msra.mxu0 0
  %1550 = vmatprep.subr.bf16.mxu0 0
  %1551 = vmatpush1.bf16.msra.mxu0 0
  %1552 = vmatprep.subr.bf16.mxu0 0
  %1553 = vmatpush1.bf16.msra.mxu0 0
  %1554 = vmatprep.subr.bf16.mxu0 0
  %1555 = vmatpush1.bf16.msra.mxu0 0
  %1556 = vmatprep.subr.bf16.mxu0 0
  %1557 = vmatpush1.bf16.msra.mxu0 0
  %1558 = vmatprep.subr.bf16.mxu0 0
  %1559 = vmatpush1.bf16.msra.mxu0 0
  %1560 = vmatprep.subr.bf16.mxu0 0
  %1561 = vmatpush1.bf16.msra.mxu0 0
  %1562 = vmatprep.subr.bf16.mxu0 0
  %1563 = vmatpush1.bf16.msra.mxu0 0
  %1564 = vmatprep.mubr.bf16.mxu0 0
  %1565 = vmatmul.mubr.bf16.gmra.mrb[0].mxu0 %v1243
  %v1566 = vpop.f32.mrb[0].mxu0
  %v1567 = vadd.f32 %v1526, %v1566
  %v1568 = vpop.f32.mrb[0].mxu0
  %v1569 = vadd.f32 %v1528, %v1568
  %v1570 = vpop.f32.mrb[0].mxu0
  %v1571 = vpop.f32.mrb[0].mxu0
  %1572 = vdwg.mxu0
  %v1573 = vpack.c.bf16 %v1403, %v1403
  %v1574 = vpack.c.bf16 %v1405, %v1405
  %v1575 = vpack.c.bf16 %v1567, %v1567
  %v1576 = vpack.c.bf16 %v1569, %v1569
  %v1577 = vtanh.bf16.pop %v1573
  %v1578 = vtanh.bf16.pop %v1574
  %v1579 = vtanh.bf16.pop %v1575
  %v1580 = vtanh.bf16.pop %v1576
  %v1581 = vld [vmem:[%s3] sm:$0xff]
  %v1582 = vld [vmem:[%s3 + $0x8] sm:$0xff]
  %v1583 = vld [vmem:[%s3 + $0x10] sm:$0xff]
  %v1584 = vld [vmem:[%s3 + $0x18] sm:$0xff]
  %v1585 = vld [vmem:[%s3 + $0x20] sm:$0xff]
  %v1586 = vld [vmem:[%s3 + $0x28] sm:$0xff]
  %v1587 = vld [vmem:[%s3 + $0x30] sm:$0xff]
  %v1588 = vld [vmem:[%s3 + $0x38] sm:$0xff]
  %v1589 = vld [vmem:[%s3 + $0x40] sm:$0xff]
  %v1590 = vld [vmem:[%s3 + $0x48] sm:$0xff]
  %v1591 = vld [vmem:[%s3 + $0x50] sm:$0xff]
  %v1592 = vld [vmem:[%s3 + $0x58] sm:$0xff]
  %v1593 = vld [vmem:[%s3 + $0x60] sm:$0xff]
  %v1594 = vld [vmem:[%s3 + $0x68] sm:$0xff]
  %v1595 = vld [vmem:[%s3 + $0x70] sm:$0xff]
  %v1596 = vld [vmem:[%s3 + $0x78] sm:$0xff]
  %v1597 = vld [vmem:[%s3 + $0x80] sm:$0xff]
  %v1598 = vld [vmem:[%s3 + $0x88] sm:$0xff]
  %v1599 = vld [vmem:[%s3 + $0x90] sm:$0xff]
  %v1600 = vld [vmem:[%s3 + $0x98] sm:$0xff]
  %v1601 = vld [vmem:[%s3 + $0xa0] sm:$0xff]
  %v1602 = vld [vmem:[%s3 + $0xa8] sm:$0xff]
  %v1603 = vld [vmem:[%s3 + $0xb0] sm:$0xff]
  %v1604 = vld [vmem:[%s3 + $0xb8] sm:$0xff]
  %v1605 = vld [vmem:[%s3 + $0xc0] sm:$0xff]
  %v1606 = vld [vmem:[%s3 + $0xc8] sm:$0xff]
  %v1607 = vld [vmem:[%s3 + $0xd0] sm:$0xff]
  %v1608 = vld [vmem:[%s3 + $0xd8] sm:$0xff]
  %v1609 = vld [vmem:[%s3 + $0xe0] sm:$0xff]
  %v1610 = vld [vmem:[%s3 + $0xe8] sm:$0xff]
  %v1611 = vld [vmem:[%s3 + $0xf0] sm:$0xff]
  %v1612 = vld [vmem:[%s3 + $0xf8] sm:$0xff]
  %v1613 = vld [vmem:[%s3 + $0x100] sm:$0xff]
  %v1614 = vld [vmem:[%s3 + $0x108] sm:$0xff]
  %v1615 = vld [vmem:[%s3 + $0x110] sm:$0xff]
  %v1616 = vld [vmem:[%s3 + $0x118] sm:$0xff]
  %v1617 = vld [vmem:[%s3 + $0x120] sm:$0xff]
  %v1618 = vld [vmem:[%s3 + $0x128] sm:$0xff]
  %v1619 = vld [vmem:[%s3 + $0x130] sm:$0xff]
  %v1620 = vld [vmem:[%s3 + $0x138] sm:$0xff]
  %v1621 = vld [vmem:[%s3 + $0x140] sm:$0xff]
  %v1622 = vld [vmem:[%s3 + $0x148] sm:$0xff]
  %v1623 = vld [vmem:[%s3 + $0x150] sm:$0xff]
  %v1624 = vld [vmem:[%s3 + $0x158] sm:$0xff]
  %v1625 = vld [vmem:[%s3 + $0x160] sm:$0xff]
  %v1626 = vld [vmem:[%s3 + $0x168] sm:$0xff]
  %v1627 = vld [vmem:[%s3 + $0x170] sm:$0xff]
  %v1628 = vld [vmem:[%s3 + $0x178] sm:$0xff]
  %v1629 = vld [vmem:[%s3 + $0x180] sm:$0xff]
  %v1630 = vld [vmem:[%s3 + $0x188] sm:$0xff]
  %v1631 = vld [vmem:[%s3 + $0x190] sm:$0xff]
  %v1632 = vld [vmem:[%s3 + $0x198] sm:$0xff]
  %v1633 = vld [vmem:[%s3 + $0x1a0] sm:$0xff]
  %v1634 = vld [vmem:[%s3 + $0x1a8] sm:$0xff]
  %v1635 = vld [vmem:[%s3 + $0x1b0] sm:$0xff]
  %v1636 = vld [vmem:[%s3 + $0x1b8] sm:$0xff]
  %v1637 = vld [vmem:[%s3 + $0x1c0] sm:$0xff]
  %v1638 = vld [vmem:[%s3 + $0x1c8] sm:$0xff]
  %v1639 = vld [vmem:[%s3 + $0x1d0] sm:$0xff]
  %v1640 = vld [vmem:[%s3 + $0x1d8] sm:$0xff]
  %v1641 = vld [vmem:[%s3 + $0x1e0] sm:$0xff]
  %v1642 = vld [vmem:[%s3 + $0x1e8] sm:$0xff]
  %v1643 = vld [vmem:[%s3 + $0x1f0] sm:$0xff]
  %v1644 = vld [vmem:[%s3 + $0x1f8] sm:$0xff]
  %v1645 = vld [vmem:[%s3 + $0x200] sm:$0xff]
  %v1646 = vld [vmem:[%s3 + $0x208] sm:$0xff]
  %v1647 = vld [vmem:[%s3 + $0x210] sm:$0xff]
  %v1648 = vld [vmem:[%s3 + $0x218] sm:$0xff]
  %v1649 = vld [vmem:[%s3 + $0x220] sm:$0xff]
  %v1650 = vld [vmem:[%s3 + $0x228] sm:$0xff]
  %v1651 = vld [vmem:[%s3 + $0x230] sm:$0xff]
  %v1652 = vld [vmem:[%s3 + $0x238] sm:$0xff]
  %v1653 = vld [vmem:[%s3 + $0x240] sm:$0xff]
  %v1654 = vld [vmem:[%s3 + $0x248] sm:$0xff]
  %v1655 = vld [vmem:[%s3 + $0x250] sm:$0xff]
  %v1656 = vld [vmem:[%s3 + $0x258] sm:$0xff]
  %v1657 = vld [vmem:[%s3 + $0x260] sm:$0xff]
  %v1658 = vld [vmem:[%s3 + $0x268] sm:$0xff]
  %v1659 = vld [vmem:[%s3 + $0x270] sm:$0xff]
  %v1660 = vld [vmem:[%s3 + $0x278] sm:$0xff]
  %v1661 = vld [vmem:[%s3 + $0x280] sm:$0xff]
  %v1662 = vld [vmem:[%s3 + $0x288] sm:$0xff]
  %v1663 = vld [vmem:[%s3 + $0x290] sm:$0xff]
  %v1664 = vld [vmem:[%s3 + $0x298] sm:$0xff]
  %v1665 = vld [vmem:[%s3 + $0x2a0] sm:$0xff]
  %v1666 = vld [vmem:[%s3 + $0x2a8] sm:$0xff]
  %v1667 = vld [vmem:[%s3 + $0x2b0] sm:$0xff]
  %v1668 = vld [vmem:[%s3 + $0x2b8] sm:$0xff]
  %v1669 = vld [vmem:[%s3 + $0x2c0] sm:$0xff]
  %v1670 = vld [vmem:[%s3 + $0x2c8] sm:$0xff]
  %v1671 = vld [vmem:[%s3 + $0x2d0] sm:$0xff]
  %v1672 = vld [vmem:[%s3 + $0x2d8] sm:$0xff]
  %v1673 = vld [vmem:[%s3 + $0x2e0] sm:$0xff]
  %v1674 = vld [vmem:[%s3 + $0x2e8] sm:$0xff]
  %v1675 = vld [vmem:[%s3 + $0x2f0] sm:$0xff]
  %v1676 = vld [vmem:[%s3 + $0x2f8] sm:$0xff]
  %v1677 = vld [vmem:[%s3 + $0x300] sm:$0xff]
  %v1678 = vld [vmem:[%s3 + $0x308] sm:$0xff]
  %v1679 = vld [vmem:[%s3 + $0x310] sm:$0xff]
  %v1680 = vld [vmem:[%s3 + $0x318] sm:$0xff]
  %v1681 = vld [vmem:[%s4] sm:$0xf]
  %v1683 = vlaneseq
  %v1684 = vshrl.u32 %v1683, 7
  %v1685 = vsub.s32 0, %v1684
  %v1686 = vrot.slane %v1681, %v1685
  %v1687 = vlaneseq
  %v1688 = vshrl.u32 %v1687, 7
  %v1689 = vsub.s32 1, %v1688
  %v1690 = vrot.slane %v1681, %v1689
  %v1691 = vlaneseq
  %v1692 = vshrl.u32 %v1691, 7
  %v1693 = vsub.s32 2, %v1692
  %v1694 = vrot.slane %v1681, %v1693
  %v1695 = vlaneseq
  %v1696 = vshrl.u32 %v1695, 7
  %v1697 = vsub.s32 3, %v1696
  %v1698 = vrot.slane %v1681, %v1697
  %v1803 = vunpack.c.l.b16 %v1581
  %v1804 = vunpack.c.h.b16 %v1581
  %v1805 = vunpack.c.l.b16 %v1582
  %v1806 = vunpack.c.h.b16 %v1582
  %v1807 = vunpack.c.l.b16 %v1583
  %v1808 = vunpack.c.h.b16 %v1583
  %v1809 = vunpack.c.l.b16 %v1584
  %v1810 = vunpack.c.h.b16 %v1584
  %v1811 = vunpack.c.l.b16 %v1585
  %v1812 = vunpack.c.h.b16 %v1585
  %v1813 = vunpack.c.l.b16 %v1586
  %v1814 = vunpack.c.h.b16 %v1586
  %v1815 = vunpack.c.l.b16 %v1587
  %v1816 = vunpack.c.h.b16 %v1587
  %v1817 = vunpack.c.l.b16 %v1588
  %v1818 = vunpack.c.h.b16 %v1588
  %v1819 = vunpack.c.l.b16 %v1589
  %v1820 = vunpack.c.h.b16 %v1589
  %v1821 = vunpack.c.l.b16 %v1590
  %v1822 = vunpack.c.h.b16 %v1590
  %v1823 = vunpack.c.l.b16 %v1591
  %v1824 = vunpack.c.h.b16 %v1591
  %v1825 = vunpack.c.l.b16 %v1592
  %v1826 = vunpack.c.h.b16 %v1592
  %v1827 = vunpack.c.l.b16 %v1593
  %v1828 = vunpack.c.h.b16 %v1593
  %v1829 = vunpack.c.l.b16 %v1594
  %v1830 = vunpack.c.h.b16 %v1594
  %v1831 = vunpack.c.l.b16 %v1595
  %v1832 = vunpack.c.h.b16 %v1595
  %v1833 = vunpack.c.l.b16 %v1596
  %v1834 = vunpack.c.h.b16 %v1596
  %v1835 = vunpack.c.l.b16 %v1597
  %v1836 = vunpack.c.h.b16 %v1597
  %v1837 = vunpack.c.l.b16 %v1598
  %v1838 = vunpack.c.h.b16 %v1598
  %v1839 = vunpack.c.l.b16 %v1599
  %v1840 = vunpack.c.h.b16 %v1599
  %v1841 = vunpack.c.l.b16 %v1600
  %v1842 = vunpack.c.h.b16 %v1600
  %v1843 = vunpack.c.l.b16 %v1601
  %v1844 = vunpack.c.h.b16 %v1601
  %v1845 = vunpack.c.l.b16 %v1602
  %v1846 = vunpack.c.h.b16 %v1602
  %v1847 = vunpack.c.l.b16 %v1603
  %v1848 = vunpack.c.h.b16 %v1603
  %v1849 = vunpack.c.l.b16 %v1604
  %v1850 = vunpack.c.h.b16 %v1604
  %v1851 = vunpack.c.l.b16 %v1605
  %v1852 = vunpack.c.h.b16 %v1605
  %v1853 = vunpack.c.l.b16 %v1606
  %v1854 = vunpack.c.h.b16 %v1606
  %v1855 = vunpack.c.l.b16 %v1607
  %v1856 = vunpack.c.h.b16 %v1607
  %v1857 = vunpack.c.l.b16 %v1608
  %v1858 = vunpack.c.h.b16 %v1608
  %v1859 = vunpack.c.l.b16 %v1609
  %v1860 = vunpack.c.h.b16 %v1609
  %v1861 = vunpack.c.l.b16 %v1610
  %v1862 = vunpack.c.h.b16 %v1610
  %v1863 = vunpack.c.l.b16 %v1611
  %v1864 = vunpack.c.h.b16 %v1611
  %v1865 = vunpack.c.l.b16 %v1612
  %v1866 = vunpack.c.h.b16 %v1612
  %v1867 = vunpack.c.l.b16 %v1613
  %v1868 = vunpack.c.h.b16 %v1613
  %v1869 = vunpack.c.l.b16 %v1614
  %v1870 = vunpack.c.h.b16 %v1614
  %v1871 = vunpack.c.l.b16 %v1615
  %v1872 = vunpack.c.h.b16 %v1615
  %v1873 = vunpack.c.l.b16 %v1616
  %v1874 = vunpack.c.h.b16 %v1616
  %v1875 = vunpack.c.l.b16 %v1617
  %v1876 = vunpack.c.h.b16 %v1617
  %v1877 = vunpack.c.l.b16 %v1618
  %v1878 = vunpack.c.h.b16 %v1618
  %v1879 = vunpack.c.l.b16 %v1619
  %v1880 = vunpack.c.h.b16 %v1619
  %v1881 = vunpack.c.l.b16 %v1620
  %v1882 = vunpack.c.h.b16 %v1620
  %v1883 = vunpack.c.l.b16 %v1621
  %v1884 = vunpack.c.h.b16 %v1621
  %v1885 = vunpack.c.l.b16 %v1622
  %v1886 = vunpack.c.h.b16 %v1622
  %v1887 = vunpack.c.l.b16 %v1623
  %v1888 = vunpack.c.h.b16 %v1623
  %v1889 = vunpack.c.l.b16 %v1624
  %v1890 = vunpack.c.h.b16 %v1624
  %v1891 = vunpack.c.l.b16 %v1625
  %v1892 = vunpack.c.h.b16 %v1625
  %v1893 = vunpack.c.l.b16 %v1626
  %v1894 = vunpack.c.h.b16 %v1626
  %v1895 = vunpack.c.l.b16 %v1627
  %v1896 = vunpack.c.h.b16 %v1627
  %v1897 = vunpack.c.l.b16 %v1628
  %v1898 = vunpack.c.h.b16 %v1628
  %v1899 = vunpack.c.l.b16 %v1629
  %v1900 = vunpack.c.h.b16 %v1629
  %v1901 = vunpack.c.l.b16 %v1630
  %v1902 = vunpack.c.h.b16 %v1630
  %v1903 = vunpack.c.l.b16 %v1631
  %v1904 = vunpack.c.h.b16 %v1631
  %v1905 = vunpack.c.l.b16 %v1632
  %v1906 = vunpack.c.h.b16 %v1632
  %v1907 = vunpack.c.l.b16 %v1633
  %v1908 = vunpack.c.h.b16 %v1633
  %v1909 = vunpack.c.l.b16 %v1634
  %v1910 = vunpack.c.h.b16 %v1634
  %v1911 = vunpack.c.l.b16 %v1635
  %v1912 = vunpack.c.h.b16 %v1635
  %v1913 = vunpack.c.l.b16 %v1636
  %v1914 = vunpack.c.h.b16 %v1636
  %v1915 = vunpack.c.l.b16 %v1637
  %v1916 = vunpack.c.h.b16 %v1637
  %v1917 = vunpack.c.l.b16 %v1638
  %v1918 = vunpack.c.h.b16 %v1638
  %v1919 = vunpack.c.l.b16 %v1639
  %v1920 = vunpack.c.h.b16 %v1639
  %v1921 = vunpack.c.l.b16 %v1640
  %v1922 = vunpack.c.h.b16 %v1640
  %v1923 = vunpack.c.l.b16 %v1641
  %v1924 = vunpack.c.h.b16 %v1641
  %v1925 = vunpack.c.l.b16 %v1642
  %v1926 = vunpack.c.h.b16 %v1642
  %v1927 = vunpack.c.l.b16 %v1643
  %v1928 = vunpack.c.h.b16 %v1643
  %v1929 = vunpack.c.l.b16 %v1644
  %v1930 = vunpack.c.h.b16 %v1644
  %v1931 = vunpack.c.l.b16 %v1645
  %v1932 = vunpack.c.h.b16 %v1645
  %v1933 = vunpack.c.l.b16 %v1646
  %v1934 = vunpack.c.h.b16 %v1646
  %v1935 = vunpack.c.l.b16 %v1647
  %v1936 = vunpack.c.h.b16 %v1647
  %v1937 = vunpack.c.l.b16 %v1648
  %v1938 = vunpack.c.h.b16 %v1648
  %v1939 = vunpack.c.l.b16 %v1649
  %v1940 = vunpack.c.h.b16 %v1649
  %v1941 = vunpack.c.l.b16 %v1650
  %v1942 = vunpack.c.h.b16 %v1650
  %v1943 = vunpack.c.l.b16 %v1651
  %v1944 = vunpack.c.h.b16 %v1651
  %v1945 = vunpack.c.l.b16 %v1652
  %v1946 = vunpack.c.h.b16 %v1652
  %v1947 = vunpack.c.l.b16 %v1653
  %v1948 = vunpack.c.h.b16 %v1653
  %v1949 = vunpack.c.l.b16 %v1654
  %v1950 = vunpack.c.h.b16 %v1654
  %v1951 = vunpack.c.l.b16 %v1655
  %v1952 = vunpack.c.h.b16 %v1655
  %v1953 = vunpack.c.l.b16 %v1656
  %v1954 = vunpack.c.h.b16 %v1656
  %v1955 = vunpack.c.l.b16 %v1657
  %v1956 = vunpack.c.h.b16 %v1657
  %v1957 = vunpack.c.l.b16 %v1658
  %v1958 = vunpack.c.h.b16 %v1658
  %v1959 = vunpack.c.l.b16 %v1659
  %v1960 = vunpack.c.h.b16 %v1659
  %v1961 = vunpack.c.l.b16 %v1660
  %v1962 = vunpack.c.h.b16 %v1660
  %v1963 = vunpack.c.l.b16 %v1661
  %v1964 = vunpack.c.h.b16 %v1661
  %v1965 = vunpack.c.l.b16 %v1662
  %v1966 = vunpack.c.h.b16 %v1662
  %v1967 = vunpack.c.l.b16 %v1663
  %v1968 = vunpack.c.h.b16 %v1663
  %v1969 = vunpack.c.l.b16 %v1664
  %v1970 = vunpack.c.h.b16 %v1664
  %v1971 = vunpack.c.l.b16 %v1665
  %v1972 = vunpack.c.h.b16 %v1665
  %v1973 = vunpack.c.l.b16 %v1666
  %v1974 = vunpack.c.h.b16 %v1666
  %v1975 = vunpack.c.l.b16 %v1667
  %v1976 = vunpack.c.h.b16 %v1667
  %v1977 = vunpack.c.l.b16 %v1668
  %v1978 = vunpack.c.h.b16 %v1668
  %v1979 = vunpack.c.l.b16 %v1669
  %v1980 = vunpack.c.h.b16 %v1669
  %v1981 = vunpack.c.l.b16 %v1670
  %v1982 = vunpack.c.h.b16 %v1670
  %v1983 = vunpack.c.l.b16 %v1671
  %v1984 = vunpack.c.h.b16 %v1671
  %v1985 = vunpack.c.l.b16 %v1672
  %v1986 = vunpack.c.h.b16 %v1672
  %v1987 = vunpack.c.l.b16 %v1673
  %v1988 = vunpack.c.h.b16 %v1673
  %v1989 = vunpack.c.l.b16 %v1674
  %v1990 = vunpack.c.h.b16 %v1674
  %v1991 = vunpack.c.l.b16 %v1675
  %v1992 = vunpack.c.h.b16 %v1675
  %v1993 = vunpack.c.l.b16 %v1676
  %v1994 = vunpack.c.h.b16 %v1676
  %v1995 = vunpack.c.l.b16 %v1677
  %v1996 = vunpack.c.h.b16 %v1677
  %v1997 = vunpack.c.l.b16 %v1678
  %v1998 = vunpack.c.h.b16 %v1678
  %v1999 = vunpack.c.l.b16 %v1679
  %v2000 = vunpack.c.h.b16 %v1679
  %v2001 = vunpack.c.l.b16 %v1680
  %v2002 = vunpack.c.h.b16 %v1680
  %v2003 = vpack.c.b16 %v1807, %v1803
  %v2004 = vpack.c.b16 %v1808, %v1804
  %v2005 = vpack.c.b16 %v1809, %v1805
  %v2006 = vpack.c.b16 %v1810, %v1806
  %v2007 = vpack.c.b16 %v1815, %v1811
  %v2008 = vpack.c.b16 %v1816, %v1812
  %v2009 = vpack.c.b16 %v1817, %v1813
  %v2010 = vpack.c.b16 %v1818, %v1814
  %v2011 = vpack.c.b16 %v1823, %v1819
  %v2012 = vpack.c.b16 %v1824, %v1820
  %v2013 = vpack.c.b16 %v1825, %v1821
  %v2014 = vpack.c.b16 %v1826, %v1822
  %v2015 = vpack.c.b16 %v1831, %v1827
  %v2016 = vpack.c.b16 %v1832, %v1828
  %v2017 = vpack.c.b16 %v1833, %v1829
  %v2018 = vpack.c.b16 %v1834, %v1830
  %v2019 = vpack.c.b16 %v1839, %v1835
  %v2020 = vpack.c.b16 %v1840, %v1836
  %v2021 = vpack.c.b16 %v1841, %v1837
  %v2022 = vpack.c.b16 %v1842, %v1838
  %v2023 = vpack.c.b16 %v1847, %v1843
  %v2024 = vpack.c.b16 %v1848, %v1844
  %v2025 = vpack.c.b16 %v1849, %v1845
  %v2026 = vpack.c.b16 %v1850, %v1846
  %v2027 = vpack.c.b16 %v1855, %v1851
  %v2028 = vpack.c.b16 %v1856, %v1852
  %v2029 = vpack.c.b16 %v1857, %v1853
  %v2030 = vpack.c.b16 %v1858, %v1854
  %v2031 = vpack.c.b16 %v1863, %v1859
  %v2032 = vpack.c.b16 %v1864, %v1860
  %v2033 = vpack.c.b16 %v1865, %v1861
  %v2034 = vpack.c.b16 %v1866, %v1862
  %v2035 = vpack.c.b16 %v1871, %v1867
  %v2036 = vpack.c.b16 %v1872, %v1868
  %v2037 = vpack.c.b16 %v1873, %v1869
  %v2038 = vpack.c.b16 %v1874, %v1870
  %v2039 = vpack.c.b16 %v1879, %v1875
  %v2040 = vpack.c.b16 %v1880, %v1876
  %v2041 = vpack.c.b16 %v1881, %v1877
  %v2042 = vpack.c.b16 %v1882, %v1878
  %v2043 = vpack.c.b16 %v1887, %v1883
  %v2044 = vpack.c.b16 %v1888, %v1884
  %v2045 = vpack.c.b16 %v1889, %v1885
  %v2046 = vpack.c.b16 %v1890, %v1886
  %v2047 = vpack.c.b16 %v1895, %v1891
  %v2048 = vpack.c.b16 %v1896, %v1892
  %v2049 = vpack.c.b16 %v1897, %v1893
  %v2050 = vpack.c.b16 %v1898, %v1894
  %v2051 = vpack.c.b16 %v1903, %v1899
  %v2052 = vpack.c.b16 %v1904, %v1900
  %v2053 = vpack.c.b16 %v1905, %v1901
  %v2054 = vpack.c.b16 %v1906, %v1902
  %v2055 = vpack.c.b16 %v1911, %v1907
  %v2056 = vpack.c.b16 %v1912, %v1908
  %v2057 = vpack.c.b16 %v1913, %v1909
  %v2058 = vpack.c.b16 %v1914, %v1910
  %v2059 = vpack.c.b16 %v1919, %v1915
  %v2060 = vpack.c.b16 %v1920, %v1916
  %v2061 = vpack.c.b16 %v1921, %v1917
  %v2062 = vpack.c.b16 %v1922, %v1918
  %v2063 = vpack.c.b16 %v1927, %v1923
  %v2064 = vpack.c.b16 %v1928, %v1924
  %v2065 = vpack.c.b16 %v1929, %v1925
  %v2066 = vpack.c.b16 %v1930, %v1926
  %v2067 = vpack.c.b16 %v1935, %v1931
  %v2068 = vpack.c.b16 %v1936, %v1932
  %v2069 = vpack.c.b16 %v1937, %v1933
  %v2070 = vpack.c.b16 %v1938, %v1934
  %v2071 = vpack.c.b16 %v1943, %v1939
  %v2072 = vpack.c.b16 %v1944, %v1940
  %v2073 = vpack.c.b16 %v1945, %v1941
  %v2074 = vpack.c.b16 %v1946, %v1942
  %v2075 = vpack.c.b16 %v1951, %v1947
  %v2076 = vpack.c.b16 %v1952, %v1948
  %v2077 = vpack.c.b16 %v1953, %v1949
  %v2078 = vpack.c.b16 %v1954, %v1950
  %v2079 = vpack.c.b16 %v1959, %v1955
  %v2080 = vpack.c.b16 %v1960, %v1956
  %v2081 = vpack.c.b16 %v1961, %v1957
  %v2082 = vpack.c.b16 %v1962, %v1958
  %v2083 = vpack.c.b16 %v1967, %v1963
  %v2084 = vpack.c.b16 %v1968, %v1964
  %v2085 = vpack.c.b16 %v1969, %v1965
  %v2086 = vpack.c.b16 %v1970, %v1966
  %v2087 = vpack.c.b16 %v1975, %v1971
  %v2088 = vpack.c.b16 %v1976, %v1972
  %v2089 = vpack.c.b16 %v1977, %v1973
  %v2090 = vpack.c.b16 %v1978, %v1974
  %v2091 = vpack.c.b16 %v1983, %v1979
  %v2092 = vpack.c.b16 %v1984, %v1980
  %v2093 = vpack.c.b16 %v1985, %v1981
  %v2094 = vpack.c.b16 %v1986, %v1982
  %v2095 = vpack.c.b16 %v1991, %v1987
  %v2096 = vpack.c.b16 %v1992, %v1988
  %v2097 = vpack.c.b16 %v1993, %v1989
  %v2098 = vpack.c.b16 %v1994, %v1990
  %v2099 = vpack.c.b16 %v1999, %v1995
  %v2100 = vpack.c.b16 %v2000, %v1996
  %v2101 = vpack.c.b16 %v2001, %v1997
  %v2102 = vpack.c.b16 %v2002, %v1998
  %v2204 = vsel %vm1241, %v1580, 0
  %2206 = vmatprep.subr.bf16.mxu0 %v2004
  %2207 = vmatpush1.bf16.msra.mxu0 %v2003
  %2208 = vmatprep.subr.bf16.mxu0 %v2008
  %2209 = vmatpush1.bf16.msra.mxu0 %v2007
  %2210 = vmatprep.subr.bf16.mxu0 %v2012
  %2211 = vmatpush1.bf16.msra.mxu0 %v2011
  %2212 = vmatprep.subr.bf16.mxu0 %v2016
  %2213 = vmatpush1.bf16.msra.mxu0 %v2015
  %2214 = vmatprep.subr.bf16.mxu0 %v2020
  %2215 = vmatpush1.bf16.msra.mxu0 %v2019
  %2216 = vmatprep.subr.bf16.mxu0 %v2024
  %2217 = vmatpush1.bf16.msra.mxu0 %v2023
  %2218 = vmatprep.subr.bf16.mxu0 %v2028
  %2219 = vmatpush1.bf16.msra.mxu0 %v2027
  %2220 = vmatprep.subr.bf16.mxu0 %v2032
  %2221 = vmatpush1.bf16.msra.mxu0 %v2031
  %2222 = vmatprep.subr.bf16.mxu0 %v2036
  %2223 = vmatpush1.bf16.msra.mxu0 %v2035
  %2224 = vmatprep.subr.bf16.mxu0 %v2040
  %2225 = vmatpush1.bf16.msra.mxu0 %v2039
  %2226 = vmatprep.subr.bf16.mxu0 %v2044
  %2227 = vmatpush1.bf16.msra.mxu0 %v2043
  %2228 = vmatprep.subr.bf16.mxu0 %v2048
  %2229 = vmatpush1.bf16.msra.mxu0 %v2047
  %2230 = vmatprep.subr.bf16.mxu0 %v2052
  %2231 = vmatpush1.bf16.msra.mxu0 %v2051
  %2232 = vmatprep.subr.bf16.mxu0 %v2056
  %2233 = vmatpush1.bf16.msra.mxu0 %v2055
  %2234 = vmatprep.subr.bf16.mxu0 %v2060
  %2235 = vmatpush1.bf16.msra.mxu0 %v2059
  %2236 = vmatprep.subr.bf16.mxu0 %v2064
  %2237 = vmatpush1.bf16.msra.mxu0 %v2063
  %2238 = vmatprep.mubr.bf16.mxu0 %v1578
  %2239 = vmatmul.mubr.bf16.gmra.mrb[0].mxu0 %v1577
  %v2240 = vpop.f32.mrb[0].mxu0
  %v2241 = vadd.f32 %v1686, %v2240
  %v2242 = vpop.f32.mrb[0].mxu0
  %v2243 = vadd.f32 %v1690, %v2242
  %v2244 = vpop.f32.mrb[0].mxu0
  %v2245 = vpop.f32.mrb[0].mxu0
  %2246 = vdwg.mxu0
  %2247 = vmatprep.subr.bf16.mxu0 %v2068
  %2248 = vmatpush1.bf16.msra.mxu0 %v2067
  %2249 = vmatprep.subr.bf16.mxu0 %v2072
  %2250 = vmatpush1.bf16.msra.mxu0 %v2071
  %2251 = vmatprep.subr.bf16.mxu0 %v2076
  %2252 = vmatpush1.bf16.msra.mxu0 %v2075
  %2253 = vmatprep.subr.bf16.mxu0 %v2080
  %2254 = vmatpush1.bf16.msra.mxu0 %v2079
  %2255 = vmatprep.subr.bf16.mxu0 %v2084
  %2256 = vmatpush1.bf16.msra.mxu0 %v2083
  %2257 = vmatprep.subr.bf16.mxu0 %v2088
  %2258 = vmatpush1.bf16.msra.mxu0 %v2087
  %2259 = vmatprep.subr.bf16.mxu0 %v2092
  %2260 = vmatpush1.bf16.msra.mxu0 %v2091
  %2261 = vmatprep.subr.bf16.mxu0 %v2096
  %2262 = vmatpush1.bf16.msra.mxu0 %v2095
  %2263 = vmatprep.subr.bf16.mxu0 %v2100
  %2264 = vmatpush1.bf16.msra.mxu0 %v2099
  %2265 = vmatprep.subr.bf16.mxu0 0
  %2266 = vmatpush1.bf16.msra.mxu0 0
  %2267 = vmatprep.subr.bf16.mxu0 0
  %2268 = vmatpush1.bf16.msra.mxu0 0
  %2269 = vmatprep.subr.bf16.mxu0 0
  %2270 = vmatpush1.bf16.msra.mxu0 0
  %2271 = vmatprep.subr.bf16.mxu0 0
  %2272 = vmatpush1.bf16.msra.mxu0 0
  %2273 = vmatprep.subr.bf16.mxu0 0
  %2274 = vmatpush1.bf16.msra.mxu0 0
  %2275 = vmatprep.subr.bf16.mxu0 0
  %2276 = vmatpush1.bf16.msra.mxu0 0
  %2277 = vmatprep.subr.bf16.mxu0 0
  %2278 = vmatpush1.bf16.msra.mxu0 0
  %2279 = vmatprep.mubr.bf16.mxu0 %v2204
  %2280 = vmatmul.mubr.bf16.gmra.mrb[0].mxu0 %v1579
  %v2281 = vpop.f32.mrb[0].mxu0
  %v2282 = vadd.f32 %v2241, %v2281
  %v2283 = vpop.f32.mrb[0].mxu0
  %v2284 = vadd.f32 %v2243, %v2283
  %v2285 = vpop.f32.mrb[0].mxu0
  %v2286 = vpop.f32.mrb[0].mxu0
  %2287 = vdwg.mxu0
  %2288 = vmatprep.subr.bf16.mxu0 %v2006
  %2289 = vmatpush1.bf16.msra.mxu0 %v2005
  %2290 = vmatprep.subr.bf16.mxu0 %v2010
  %2291 = vmatpush1.bf16.msra.mxu0 %v2009
  %2292 = vmatprep.subr.bf16.mxu0 %v2014
  %2293 = vmatpush1.bf16.msra.mxu0 %v2013
  %2294 = vmatprep.subr.bf16.mxu0 %v2018
  %2295 = vmatpush1.bf16.msra.mxu0 %v2017
  %2296 = vmatprep.subr.bf16.mxu0 %v2022
  %2297 = vmatpush1.bf16.msra.mxu0 %v2021
  %2298 = vmatprep.subr.bf16.mxu0 %v2026
  %2299 = vmatpush1.bf16.msra.mxu0 %v2025
  %2300 = vmatprep.subr.bf16.mxu0 %v2030
  %2301 = vmatpush1.bf16.msra.mxu0 %v2029
  %2302 = vmatprep.subr.bf16.mxu0 %v2034
  %2303 = vmatpush1.bf16.msra.mxu0 %v2033
  %2304 = vmatprep.subr.bf16.mxu0 %v2038
  %2305 = vmatpush1.bf16.msra.mxu0 %v2037
  %2306 = vmatprep.subr.bf16.mxu0 %v2042
  %2307 = vmatpush1.bf16.msra.mxu0 %v2041
  %2308 = vmatprep.subr.bf16.mxu0 %v2046
  %2309 = vmatpush1.bf16.msra.mxu0 %v2045
  %2310 = vmatprep.subr.bf16.mxu0 %v2050
  %2311 = vmatpush1.bf16.msra.mxu0 %v2049
  %2312 = vmatprep.subr.bf16.mxu0 %v2054
  %2313 = vmatpush1.bf16.msra.mxu0 %v2053
  %2314 = vmatprep.subr.bf16.mxu0 %v2058
  %2315 = vmatpush1.bf16.msra.mxu0 %v2057
  %2316 = vmatprep.subr.bf16.mxu0 %v2062
  %2317 = vmatpush1.bf16.msra.mxu0 %v2061
  %2318 = vmatprep.subr.bf16.mxu0 %v2066
  %2319 = vmatpush1.bf16.msra.mxu0 %v2065
  %2320 = vmatprep.mubr.bf16.mxu0 %v1578
  %2321 = vmatmul.mubr.bf16.gmra.mrb[0].mxu0 %v1577
  %v2322 = vpop.f32.mrb[0].mxu0
  %v2323 = vadd.f32 %v1694, %v2322
  %v2324 = vpop.f32.mrb[0].mxu0
  %v2325 = vadd.f32 %v1698, %v2324
  %v2326 = vpop.f32.mrb[0].mxu0
  %v2327 = vpop.f32.mrb[0].mxu0
  %2328 = vdwg.mxu0
  %2329 = vmatprep.subr.bf16.mxu0 %v2070
  %2330 = vmatpush1.bf16.msra.mxu0 %v2069
  %2331 = vmatprep.subr.bf16.mxu0 %v2074
  %2332 = vmatpush1.bf16.msra.mxu0 %v2073
  %2333 = vmatprep.subr.bf16.mxu0 %v2078
  %2334 = vmatpush1.bf16.msra.mxu0 %v2077
  %2335 = vmatprep.subr.bf16.mxu0 %v2082
  %2336 = vmatpush1.bf16.msra.mxu0 %v2081
  %2337 = vmatprep.subr.bf16.mxu0 %v2086
  %2338 = vmatpush1.bf16.msra.mxu0 %v2085
  %2339 = vmatprep.subr.bf16.mxu0 %v2090
  %2340 = vmatpush1.bf16.msra.mxu0 %v2089
  %2341 = vmatprep.subr.bf16.mxu0 %v2094
  %2342 = vmatpush1.bf16.msra.mxu0 %v2093
  %2343 = vmatprep.subr.bf16.mxu0 %v2098
  %2344 = vmatpush1.bf16.msra.mxu0 %v2097
  %2345 = vmatprep.subr.bf16.mxu0 %v2102
  %2346 = vmatpush1.bf16.msra.mxu0 %v2101
  %2347 = vmatprep.subr.bf16.mxu0 0
  %2348 = vmatpush1.bf16.msra.mxu0 0
  %2349 = vmatprep.subr.bf16.mxu0 0
  %2350 = vmatpush1.bf16.msra.mxu0 0
  %2351 = vmatprep.subr.bf16.mxu0 0
  %2352 = vmatpush1.bf16.msra.mxu0 0
  %2353 = vmatprep.subr.bf16.mxu0 0
  %2354 = vmatpush1.bf16.msra.mxu0 0
  %2355 = vmatprep.subr.bf16.mxu0 0
  %2356 = vmatpush1.bf16.msra.mxu0 0
  %2357 = vmatprep.subr.bf16.mxu0 0
  %2358 = vmatpush1.bf16.msra.mxu0 0
  %2359 = vmatprep.subr.bf16.mxu0 0
  %2360 = vmatpush1.bf16.msra.mxu0 0
  %2361 = vmatprep.mubr.bf16.mxu0 %v2204
  %2362 = vmatmul.mubr.bf16.gmra.mrb[0].mxu0 %v1579
  %v2363 = vpop.f32.mrb[0].mxu0
  %v2364 = vadd.f32 %v2323, %v2363
  %v2365 = vpop.f32.mrb[0].mxu0
  %v2366 = vadd.f32 %v2325, %v2365
  %v2367 = vpop.f32.mrb[0].mxu0
  %v2368 = vpop.f32.mrb[0].mxu0
  %2369 = vdwg.mxu0
  %v2370 = vpack.c.bf16 %v2282, %v2282
  %v2371 = vpack.c.bf16 %v2284, %v2284
  %v2372 = vpack.c.bf16 %v2364, %v2364
  %v2373 = vpack.c.bf16 %v2366, %v2366
  %v2374 = vtanh.bf16.pop %v2370
  %v2375 = vtanh.bf16.pop %v2371
  %v2376 = vtanh.bf16.pop %v2372
  %v2377 = vtanh.bf16.pop %v2373
  %v2378 = vunpack.c.l.bf16 %v2374
  %v2379 = vunpack.c.l.bf16 %v2375
  %v2380 = vunpack.c.l.bf16 %v2376
  %v2381 = vunpack.c.l.bf16 %v2377
  %v2382 = vld [vmem:[%s5] sm:$0xf]
  %v2384 = vlaneseq
  %v2385 = vshrl.u32 %v2384, 7
  %v2386 = vsub.s32 0, %v2385
  %v2387 = vrot.slane %v2382, %v2386
  %v2388 = vlaneseq
  %v2389 = vshrl.u32 %v2388, 7
  %v2390 = vsub.s32 1, %v2389
  %v2391 = vrot.slane %v2382, %v2390
  %v2392 = vlaneseq
  %v2393 = vshrl.u32 %v2392, 7
  %v2394 = vsub.s32 2, %v2393
  %v2395 = vrot.slane %v2382, %v2394
  %v2396 = vlaneseq
  %v2397 = vshrl.u32 %v2396, 7
  %v2398 = vsub.s32 3, %v2397
  %v2399 = vrot.slane %v2382, %v2398
  %v2404 = vmul.f32 %v2378, %v2387
  %v2405 = vmul.f32 %v2379, %v2391
  %v2406 = vmul.f32 %v2380, %v2395
  %v2407 = vmul.f32 %v2381, %v2399
  %v2408 = vadd.f32 %v2404, %v2405
  %v2409 = vadd.f32 %v2408, %v2406
  %v2410 = vsel %vm1241, %v2407, 0.0
  %v2411 = vadd.f32 %v2409, %v2410
  %2412 = vadd.xlane.f32.xlu0 %v2411
  %v2413 = vpop.xlane.xlu0 %2412
  %v2414 = vld [vmem:[#allocation2] sm:$0x1]
  %v2416 = vlaneseq
  %v2417 = vshrl.u32 %v2416, 7
  %v2418 = vsub.s32 0, %v2417
  %v2419 = vrot.slane %v2414, %v2418
  %v2421 = vadd.f32 %v2413, %v2419
  %vm2422 = vcmask 7168
  %2423 = vst.msk [vmem:[%s7] sm:$0xff] %vm2422, %v2421
  // Predicated region
  $region30: #{tpu_custom_call.1} parent=0 // pred_check
    _
  $region31: #{tpu_custom_call.1} parent=0 // pred_check_branch
    %2425 = sbr.rel (0) target = $region33
  $region32: #{tpu_custom_call.1} parent=0 // pred_region
    _
  $region33: #{tpu_custom_call.1} parent=0 // pred_fallthru
    _
  // Predicated region
  $region34: #{tpu_custom_call.1} parent=0 // pred_check
    _
  $region35: #{tpu_custom_call.1} parent=0 // pred_check_branch
    %2427 = sbr.rel (0) target = $region37
  $region36: #{tpu_custom_call.1} parent=0 // pred_region
    _
  $region37: #{tpu_custom_call.1} parent=0 // pred_fallthru
    _

</llo_original>
